<compile_context>
chip_gen: v6e
topology: v6e:2x2x1
jax: 0.10.0
libtpu: 0.0.40
codegen_flags: <defaults>
</compile_context>

<pallas_src>
import functools

import jax
import jax.numpy as jnp
from jax.experimental import pallas as pl
from jax.experimental.pallas import tpu as pltpu


def _round_up(v, m):
    return ((v + m - 1) // m) * m


# ------------------------- fused two-conv forward -------------------------- #

def _fused_feature_forward(prep, x):
    """conv1 -> ReLU -> conv2 -> ReLU in one fused Pallas kernel.

    Returns (feat1, feat2), the hooked post-ReLU activations, in NCHW.
    """
    n, c, h, w = x.shape
    hp, wp = h + 2, w + 2                 # zero-padded spatial dims
    pw = h * wp                           # flat output lanes per image (row stride wp)
    w_img = _round_up(pw, 128)            # per-image lane-dense compute width (384)
    max_off = 2 * wp + 2                  # largest 3x3 tap offset on the flat image
    L = _round_up(max(max_off + w_img, hp * wp), 128)   # per-image lane stride (512)

    w1t, b1c, w2t, b2c = prep["w1"], prep["b1"], prep["w2"], prep["b2"]
    _, oc1, cp = w1t.shape
    _, oc2, _ = w2t.shape
    assert cp >= c

    # Images packed per grid step (lane-concatenated).  >= 2 steps when n >= 2
    # keeps both v7x TensorCores busy; the cap bounds vreg pressure.
    B = min(max(1, -(-n // 2)), 4)
    steps = -(-n // B)
    n_pad = steps * B
    W_tot = (B - 1) * L + w_img           # per-step compute/output width (mult of 128)
    act_base = 128                        # 128-aligned lane offset of the staged a1
    base2 = act_base - (wp + 1)           # conv2 tap base offset into the act scratch
    assert base2 >= 0
    act_w = act_base + W_tot + 128        # scratch width (covers all conv2 tap reads)
    offs = tuple(i * wp + j for i in range(3) for j in range(3))

    # ---- tiny XLA-side prep: pad batch/channels/spatial, flatten, pack B/step ----
    xp = jnp.pad(x, ((0, n_pad - n), (0, cp - c), (1, 1), (1, 1)))
    xf = jnp.pad(xp.reshape(n_pad, cp, hp * wp),
                 ((0, 0), (0, 0), (0, L - hp * wp))).astype(jnp.bfloat16)
    xf = xf.reshape(steps, B, cp, L).transpose(0, 2, 1, 3).reshape(steps, cp, B * L)

    # Stage mask: result lane r is a real (non row-wrap, non tail-pad) output
    # pixel of its image iff (r % L) < pw and (r % L) % wp < w.  Constant under
    # jit (pure function of iota) -> folded by XLA, passed as a tiny operand.
    r = jnp.arange(W_tot, dtype=jnp.int32)
    q = r % L
    mask = ((q < pw) & ((q % wp) < w)).astype(jnp.float32).reshape(1, W_tot)

    def kernel(x_ref, w1_ref, b1_ref, w2_ref, b2_ref, m_ref,
               o1_ref, o2_ref, act_ref):
        xin = x_ref[0]                                         # [cp, B*L] bf16

        # -------- conv1 + bias + ReLU: 9 accumulating MXU passes ------------
        a1 = jnp.broadcast_to(b1_ref[...], (oc1, W_tot))
        for t in range(9):
            a1 = a1 + jnp.dot(w1_ref[t], xin[:, offs[t]:offs[t] + W_tot],
                              preferred_element_type=jnp.float32)
        a1 = jnp.maximum(a1, 0.0)
        o1_ref[0] = a1                                         # unmasked store

        # -------- stage a1 as a zero-padded flat image in bf16 VMEM ---------
        # 128-aligned, 128-multiple-width store; only the head/tail border
        # lanes need explicit zeros (every step - no program_id guard).
        act_ref[:, 0:act_base] = jnp.zeros((oc1, act_base), jnp.bfloat16)
        act_ref[:, act_base + W_tot:act_w] = jnp.zeros((oc1, 128), jnp.bfloat16)
        act_ref[:, act_base:act_base + W_tot] = (a1 * m_ref[...]).astype(jnp.bfloat16)

        # -------- conv2 + bias + ReLU on the VMEM-resident activation -------
        a1p = act_ref[...]                                     # [oc1, act_w] bf16
        a2 = jnp.broadcast_to(b2_ref[...], (oc2, W_tot))
        for t in range(9):
            o = base2 + offs[t]
            a2 = a2 + jnp.dot(w2_ref[t], a1p[:, o:o + W_tot],
                              preferred_element_type=jnp.float32)
        a2 = jnp.maximum(a2, 0.0)
        o2_ref[0] = a2                                         # unmasked store

    out1, out2 = pl.pallas_call(
        kernel,
        out_shape=(jax.ShapeDtypeStruct((steps, oc1, W_tot), jnp.float32),
                   jax.ShapeDtypeStruct((steps, oc2, W_tot), jnp.float32)),
        grid_spec=pltpu.PrefetchScalarGridSpec(
            num_scalar_prefetch=0,
            grid=(steps,),
            in_specs=[
                pl.BlockSpec((1, cp, B * L), lambda s: (s, 0, 0)),
                pl.BlockSpec((9, oc1, cp), lambda s: (0, 0, 0)),
                pl.BlockSpec((oc1, 1), lambda s: (0, 0)),
                pl.BlockSpec((9, oc2, oc1), lambda s: (0, 0, 0)),
                pl.BlockSpec((oc2, 1), lambda s: (0, 0)),
                pl.BlockSpec((1, W_tot), lambda s: (0, 0)),
            ],
            out_specs=(
                pl.BlockSpec((1, oc1, W_tot), lambda s: (s, 0, 0)),
                pl.BlockSpec((1, oc2, W_tot), lambda s: (s, 0, 0)),
            ),
            scratch_shapes=[pltpu.VMEM((oc1, act_w), jnp.bfloat16)],
        ),
        compiler_params=pltpu.CompilerParams(
            dimension_semantics=("parallel",)),
    )(xf, w1t, b1c, w2t, b2c, mask)

    # Lane-dense flat -> NCHW: per-image slab slice, free reshape, and a cheap
    # slice that drops the two row-wrap columns per image row.
    def extract(out, oc):
        slabs = [out[:, :, b * L:b * L + pw] for b in range(B)]
        f = jnp.stack(slabs, axis=1).reshape(n_pad, oc, h, wp)
        return f[:n, :, :, :w]

    return extract(out1, oc1), extract(out2, oc2)


# ------------------------------ wrapper class ------------------------------ #

class FeatureExtractorPallas:
    """JAX/Pallas equivalent of the PyTorch FeatureExtractor wrapped around a
    small deterministic 2-conv backbone.  Returns the hooked (post-layer)
    activations for the requested layer ids, in order, in NCHW."""

    # TODO(synk): the generic hook machinery (arbitrary wrapped model /
    # named_modules) has no Pallas equivalent; a fixed 2-conv backbone stands in.

    def __init__(self, params, layers=("conv1", "conv2")):
        self.layers = tuple(layers)

        # Hoisted, cached weight prep: tap-major [9, OC, Cin] bf16 for the MXU,
        # column biases in f32.  Done once, not per frame.
        w1, b1 = params["conv1_w"], params["conv1_b"]
        w2, b2 = params["conv2_w"], params["conv2_b"]
        oc1, c, kh, kw = w1.shape
        oc2, ic2, kh2, kw2 = w2.shape
        assert (kh, kw) == (3, 3) and (kh2, kw2) == (3, 3) and ic2 == oc1
        cp = _round_up(c, 8)
        w1p = jnp.pad(w1, ((0, 0), (0, cp - c), (0, 0), (0, 0)))
        prep = {
            "w1": jnp.asarray(w1p.transpose(2, 3, 0, 1).reshape(9, oc1, cp),
                              jnp.bfloat16),
            "b1": jnp.asarray(b1.reshape(oc1, 1), jnp.float32),
            "w2": jnp.asarray(w2.transpose(2, 3, 0, 1).reshape(9, oc2, oc1),
                              jnp.bfloat16),
            "b2": jnp.asarray(b2.reshape(oc2, 1), jnp.float32),
        }
        self._prep = jax.device_put(prep)
        self._fwd = jax.jit(functools.partial(_fused_feature_forward, self._prep))

    def __call__(self, x):
        f1, f2 = self._fwd(x)
        features = {"conv1": f1, "conv2": f2}
        # model output itself is discarded, exactly like the reference forward()
        return [features[layer_id] for layer_id in self.layers]


# --------------------------------- main ------------------------------------ #

def _make_params(key):
    k1, k2, k3, k4 = jax.random.split(key, 4)
    return {
        # conv1: 4 -> 8 channels, 3x3, pad 1
        "conv1_w": 0.1 * jax.random.normal(k1, (8, 4, 3, 3), jnp.float32),
        "conv1_b": 0.1 * jax.random.normal(k2, (8,), jnp.float32),
        # conv2: 8 -> 16 channels, 3x3, pad 1
        "conv2_w": 0.1 * jax.random.normal(k3, (16, 8, 3, 3), jnp.float32),
        "conv2_b": 0.1 * jax.random.normal(k4, (16,), jnp.float32),
    }


def _ref_conv_relu(x, w, b):
    y = jax.lax.conv_general_dilated(
        x, w, window_strides=(1, 1), padding="SAME",
        dimension_numbers=("NCHW", "OIHW", "NCHW"))
    return jnp.maximum(y + b[None, :, None, None], 0.0)


if __name__ == "__main__":
    key = jax.random.PRNGKey(0)
    kx, kp = jax.random.split(key)
    x = jax.random.normal(kx, (2, 4, 16, 16), jnp.float32)   # NCHW

    params = _make_params(kp)
    extractor = FeatureExtractorPallas(params, layers=("conv1", "conv2"))
    feats = [jax.block_until_ready(f) for f in extractor(x)]

    assert feats[0].shape == (2, 8, 16, 16)
    assert feats[1].shape == (2, 16, 16, 16)

    # numerical sanity check vs a pure-JAX reference (bf16 MXU inputs, f32 acc)
    r1 = _ref_conv_relu(x, params["conv1_w"], params["conv1_b"])
    r2 = _ref_conv_relu(r1, params["conv2_w"], params["conv2_b"])
    e1 = float(jnp.max(jnp.abs(feats[0] - r1)))
    e2 = float(jnp.max(jnp.abs(feats[1] - r2)))
    assert e1 < 5e-2 and e2 < 5e-2, (e1, e2)

    # also exercise the multi-image-per-step path (B > 1) and ragged batch pad
    x5 = jax.random.normal(kx, (5, 4, 16, 16), jnp.float32)
    f1b, f2b = [jax.block_until_ready(f) for f in extractor(x5)]
    r1b = _ref_conv_relu(x5, params["conv1_w"], params["conv1_b"])
    r2b = _ref_conv_relu(r1b, params["conv2_w"], params["conv2_b"])
    assert f1b.shape == (5, 8, 16, 16) and f2b.shape == (5, 16, 16, 16)
    e1b = float(jnp.max(jnp.abs(f1b - r1b)))
    e2b = float(jnp.max(jnp.abs(f2b - r2b)))
    assert e1b < 5e-2 and e2b < 5e-2, (e1b, e2b)

    print("KERNEL_OK")
</pallas_src>

<mosaic_0001>
module attributes {stable_mosaic.version = 11 : i64} {
  func.func @kernel(%arg0: i32, %arg1: memref<1x8x512xbf16, #tpu.memory_space<vmem>>, %arg2: memref<9x8x8xbf16, #tpu.memory_space<vmem>>, %arg3: memref<8x1xf32, #tpu.memory_space<vmem>>, %arg4: memref<9x16x8xbf16, #tpu.memory_space<vmem>>, %arg5: memref<16x1xf32, #tpu.memory_space<vmem>>, %arg6: memref<1x384xf32, #tpu.memory_space<vmem>>, %arg7: memref<1x8x384xf32, #tpu.memory_space<vmem>>, %arg8: memref<1x16x384xf32, #tpu.memory_space<vmem>>, %arg9: memref<8x640xbf16, #tpu.memory_space<vmem>>) attributes {dimension_semantics = [#tpu.dimension_semantics<parallel>], iteration_bounds = array<i64: 2>, scalar_prefetch = 0 : i64, scratch_operands = 1 : i64, tpu.core_type = #tpu.core_type<tc>, window_params = [{transform_indices = @transform_0, window_bounds = array<i64: 1, 8, 512>}, {pipeline_mode = #tpu.pipeline_mode<synchronous>, transform_indices = @transform_1, window_bounds = array<i64: 9, 8, 8>}, {pipeline_mode = #tpu.pipeline_mode<synchronous>, transform_indices = @transform_2, window_bounds = array<i64: 8, 1>}, {pipeline_mode = #tpu.pipeline_mode<synchronous>, transform_indices = @transform_3, window_bounds = array<i64: 9, 16, 8>}, {pipeline_mode = #tpu.pipeline_mode<synchronous>, transform_indices = @transform_4, window_bounds = array<i64: 16, 1>}, {pipeline_mode = #tpu.pipeline_mode<synchronous>, transform_indices = @transform_5, window_bounds = array<i64: 1, 384>}, {transform_indices = @transform_6, window_bounds = array<i64: 1, 8, 384>}, {transform_indices = @transform_7, window_bounds = array<i64: 1, 16, 384>}]} {
    %c0 = arith.constant 0 : index
    %c0_0 = arith.constant 0 : index
    %c0_1 = arith.constant 0 : index
    %0 = vector.load %arg1[%c0, %c0_0, %c0_1] : memref<1x8x512xbf16, #tpu.memory_space<vmem>>, vector<1x8x512xbf16>
    %1 = vector.shape_cast %0 : vector<1x8x512xbf16> to vector<8x512xbf16>
    %c0_2 = arith.constant 0 : index
    %c0_3 = arith.constant 0 : index
    %2 = vector.load %arg3[%c0_2, %c0_3] : memref<8x1xf32, #tpu.memory_space<vmem>>, vector<8x1xf32>
    %3 = vector.shape_cast %2 : vector<8x1xf32> to vector<8x1xf32>
    %4 = vector.broadcast %3 : vector<8x1xf32> to vector<8x384xf32>
    %c0_4 = arith.constant 0 : index
    %c0_5 = arith.constant 0 : index
    %c0_6 = arith.constant 0 : index
    %5 = vector.load %arg2[%c0_4, %c0_5, %c0_6] : memref<9x8x8xbf16, #tpu.memory_space<vmem>>, vector<1x8x8xbf16>
    %6 = vector.shape_cast %5 : vector<1x8x8xbf16> to vector<8x8xbf16>
    %7 = vector.extract_strided_slice %1 {offsets = [0, 0], sizes = [8, 384], strides = [1, 1]} : vector<8x512xbf16> to vector<8x384xbf16>
    %cst = arith.constant dense<0.000000e+00> : vector<8x384xf32>
    %8 = tpu.matmul %6, %7, %cst {dimension_numbers = #tpu.dot_dimension_numbers<[1], [0], [0], [1], [0, 0, 1, 1], [], []>} : vector<8x8xbf16>, vector<8x384xbf16>, vector<8x384xf32> -> vector<8x384xf32>
    %9 = arith.addf %4, %8 : vector<8x384xf32>
    %c1 = arith.constant 1 : index
    %c0_7 = arith.constant 0 : index
    %c0_8 = arith.constant 0 : index
    %10 = vector.load %arg2[%c1, %c0_7, %c0_8] : memref<9x8x8xbf16, #tpu.memory_space<vmem>>, vector<1x8x8xbf16>
    %11 = vector.shape_cast %10 : vector<1x8x8xbf16> to vector<8x8xbf16>
    %12 = vector.extract_strided_slice %1 {offsets = [0, 1], sizes = [8, 384], strides = [1, 1]} : vector<8x512xbf16> to vector<8x384xbf16>
    %cst_9 = arith.constant dense<0.000000e+00> : vector<8x384xf32>
    %13 = tpu.matmul %11, %12, %cst_9 {dimension_numbers = #tpu.dot_dimension_numbers<[1], [0], [0], [1], [0, 0, 1, 1], [], []>} : vector<8x8xbf16>, vector<8x384xbf16>, vector<8x384xf32> -> vector<8x384xf32>
    %14 = arith.addf %9, %13 : vector<8x384xf32>
    %c2 = arith.constant 2 : index
    %c0_10 = arith.constant 0 : index
    %c0_11 = arith.constant 0 : index
    %15 = vector.load %arg2[%c2, %c0_10, %c0_11] : memref<9x8x8xbf16, #tpu.memory_space<vmem>>, vector<1x8x8xbf16>
    %16 = vector.shape_cast %15 : vector<1x8x8xbf16> to vector<8x8xbf16>
    %17 = vector.extract_strided_slice %1 {offsets = [0, 2], sizes = [8, 384], strides = [1, 1]} : vector<8x512xbf16> to vector<8x384xbf16>
    %cst_12 = arith.constant dense<0.000000e+00> : vector<8x384xf32>
    %18 = tpu.matmul %16, %17, %cst_12 {dimension_numbers = #tpu.dot_dimension_numbers<[1], [0], [0], [1], [0, 0, 1, 1], [], []>} : vector<8x8xbf16>, vector<8x384xbf16>, vector<8x384xf32> -> vector<8x384xf32>
    %19 = arith.addf %14, %18 : vector<8x384xf32>
    %c3 = arith.constant 3 : index
    %c0_13 = arith.constant 0 : index
    %c0_14 = arith.constant 0 : index
    %20 = vector.load %arg2[%c3, %c0_13, %c0_14] : memref<9x8x8xbf16, #tpu.memory_space<vmem>>, vector<1x8x8xbf16>
    %21 = vector.shape_cast %20 : vector<1x8x8xbf16> to vector<8x8xbf16>
    %22 = vector.extract_strided_slice %1 {offsets = [0, 18], sizes = [8, 384], strides = [1, 1]} : vector<8x512xbf16> to vector<8x384xbf16>
    %cst_15 = arith.constant dense<0.000000e+00> : vector<8x384xf32>
    %23 = tpu.matmul %21, %22, %cst_15 {dimension_numbers = #tpu.dot_dimension_numbers<[1], [0], [0], [1], [0, 0, 1, 1], [], []>} : vector<8x8xbf16>, vector<8x384xbf16>, vector<8x384xf32> -> vector<8x384xf32>
    %24 = arith.addf %19, %23 : vector<8x384xf32>
    %c4 = arith.constant 4 : index
    %c0_16 = arith.constant 0 : index
    %c0_17 = arith.constant 0 : index
    %25 = vector.load %arg2[%c4, %c0_16, %c0_17] : memref<9x8x8xbf16, #tpu.memory_space<vmem>>, vector<1x8x8xbf16>
    %26 = vector.shape_cast %25 : vector<1x8x8xbf16> to vector<8x8xbf16>
    %27 = vector.extract_strided_slice %1 {offsets = [0, 19], sizes = [8, 384], strides = [1, 1]} : vector<8x512xbf16> to vector<8x384xbf16>
    %cst_18 = arith.constant dense<0.000000e+00> : vector<8x384xf32>
    %28 = tpu.matmul %26, %27, %cst_18 {dimension_numbers = #tpu.dot_dimension_numbers<[1], [0], [0], [1], [0, 0, 1, 1], [], []>} : vector<8x8xbf16>, vector<8x384xbf16>, vector<8x384xf32> -> vector<8x384xf32>
    %29 = arith.addf %24, %28 : vector<8x384xf32>
    %c5 = arith.constant 5 : index
    %c0_19 = arith.constant 0 : index
    %c0_20 = arith.constant 0 : index
    %30 = vector.load %arg2[%c5, %c0_19, %c0_20] : memref<9x8x8xbf16, #tpu.memory_space<vmem>>, vector<1x8x8xbf16>
    %31 = vector.shape_cast %30 : vector<1x8x8xbf16> to vector<8x8xbf16>
    %32 = vector.extract_strided_slice %1 {offsets = [0, 20], sizes = [8, 384], strides = [1, 1]} : vector<8x512xbf16> to vector<8x384xbf16>
    %cst_21 = arith.constant dense<0.000000e+00> : vector<8x384xf32>
    %33 = tpu.matmul %31, %32, %cst_21 {dimension_numbers = #tpu.dot_dimension_numbers<[1], [0], [0], [1], [0, 0, 1, 1], [], []>} : vector<8x8xbf16>, vector<8x384xbf16>, vector<8x384xf32> -> vector<8x384xf32>
    %34 = arith.addf %29, %33 : vector<8x384xf32>
    %c6 = arith.constant 6 : index
    %c0_22 = arith.constant 0 : index
    %c0_23 = arith.constant 0 : index
    %35 = vector.load %arg2[%c6, %c0_22, %c0_23] : memref<9x8x8xbf16, #tpu.memory_space<vmem>>, vector<1x8x8xbf16>
    %36 = vector.shape_cast %35 : vector<1x8x8xbf16> to vector<8x8xbf16>
    %37 = vector.extract_strided_slice %1 {offsets = [0, 36], sizes = [8, 384], strides = [1, 1]} : vector<8x512xbf16> to vector<8x384xbf16>
    %cst_24 = arith.constant dense<0.000000e+00> : vector<8x384xf32>
    %38 = tpu.matmul %36, %37, %cst_24 {dimension_numbers = #tpu.dot_dimension_numbers<[1], [0], [0], [1], [0, 0, 1, 1], [], []>} : vector<8x8xbf16>, vector<8x384xbf16>, vector<8x384xf32> -> vector<8x384xf32>
    %39 = arith.addf %34, %38 : vector<8x384xf32>
    %c7 = arith.constant 7 : index
    %c0_25 = arith.constant 0 : index
    %c0_26 = arith.constant 0 : index
    %40 = vector.load %arg2[%c7, %c0_25, %c0_26] : memref<9x8x8xbf16, #tpu.memory_space<vmem>>, vector<1x8x8xbf16>
    %41 = vector.shape_cast %40 : vector<1x8x8xbf16> to vector<8x8xbf16>
    %42 = vector.extract_strided_slice %1 {offsets = [0, 37], sizes = [8, 384], strides = [1, 1]} : vector<8x512xbf16> to vector<8x384xbf16>
    %cst_27 = arith.constant dense<0.000000e+00> : vector<8x384xf32>
    %43 = tpu.matmul %41, %42, %cst_27 {dimension_numbers = #tpu.dot_dimension_numbers<[1], [0], [0], [1], [0, 0, 1, 1], [], []>} : vector<8x8xbf16>, vector<8x384xbf16>, vector<8x384xf32> -> vector<8x384xf32>
    %44 = arith.addf %39, %43 : vector<8x384xf32>
    %c8 = arith.constant 8 : index
    %c0_28 = arith.constant 0 : index
    %c0_29 = arith.constant 0 : index
    %45 = vector.load %arg2[%c8, %c0_28, %c0_29] : memref<9x8x8xbf16, #tpu.memory_space<vmem>>, vector<1x8x8xbf16>
    %46 = vector.shape_cast %45 : vector<1x8x8xbf16> to vector<8x8xbf16>
    %47 = vector.extract_strided_slice %1 {offsets = [0, 38], sizes = [8, 384], strides = [1, 1]} : vector<8x512xbf16> to vector<8x384xbf16>
    %cst_30 = arith.constant dense<0.000000e+00> : vector<8x384xf32>
    %48 = tpu.matmul %46, %47, %cst_30 {dimension_numbers = #tpu.dot_dimension_numbers<[1], [0], [0], [1], [0, 0, 1, 1], [], []>} : vector<8x8xbf16>, vector<8x384xbf16>, vector<8x384xf32> -> vector<8x384xf32>
    %49 = arith.addf %44, %48 : vector<8x384xf32>
    %cst_31 = arith.constant 0.000000e+00 : f32
    %50 = vector.broadcast %cst_31 : f32 to vector<8x384xf32>
    %51 = arith.maximumf %49, %50 : vector<8x384xf32>
    %c0_32 = arith.constant 0 : index
    %c0_33 = arith.constant 0 : index
    %c0_34 = arith.constant 0 : index
    %52 = vector.load %arg7[%c0_32, %c0_33, %c0_34] : memref<1x8x384xf32, #tpu.memory_space<vmem>>, vector<1x8x384xf32>
    %53 = vector.shape_cast %52 : vector<1x8x384xf32> to vector<8x384xf32>
    %54 = vector.shape_cast %51 : vector<8x384xf32> to vector<1x8x384xf32>
    tpu.vector_store %arg7[%c0_32, %c0_33, %c0_34], %54 {strides = array<i32>} : memref<1x8x384xf32, #tpu.memory_space<vmem>>, vector<1x8x384xf32>,
    %cst_35 = arith.constant 0.000000e+00 : bf16
    %55 = vector.broadcast %cst_35 : bf16 to vector<8x128xbf16>
    %c0_36 = arith.constant 0 : index
    %c0_37 = arith.constant 0 : index
    %56 = vector.load %arg9[%c0_36, %c0_37] : memref<8x640xbf16, #tpu.memory_space<vmem>>, vector<8x128xbf16>
    tpu.vector_store %arg9[%c0_36, %c0_37], %55 {strides = array<i32>} : memref<8x640xbf16, #tpu.memory_space<vmem>>, vector<8x128xbf16>,
    %cst_38 = arith.constant 0.000000e+00 : bf16
    %57 = vector.broadcast %cst_38 : bf16 to vector<8x128xbf16>
    %c0_39 = arith.constant 0 : index
    %c512 = arith.constant 512 : index
    %58 = vector.load %arg9[%c0_39, %c512] : memref<8x640xbf16, #tpu.memory_space<vmem>>, vector<8x128xbf16>
    tpu.vector_store %arg9[%c0_39, %c512], %57 {strides = array<i32>} : memref<8x640xbf16, #tpu.memory_space<vmem>>, vector<8x128xbf16>,
    %c0_40 = arith.constant 0 : index
    %c0_41 = arith.constant 0 : index
    %59 = vector.load %arg6[%c0_40, %c0_41] : memref<1x384xf32, #tpu.memory_space<vmem>>, vector<1x384xf32>
    %60 = vector.broadcast %59 : vector<1x384xf32> to vector<8x384xf32>
    %61 = arith.mulf %51, %60 : vector<8x384xf32>
    %62 = arith.truncf %61 : vector<8x384xf32> to vector<8x384xbf16>
    %c0_42 = arith.constant 0 : index
    %c128 = arith.constant 128 : index
    %63 = vector.load %arg9[%c0_42, %c128] : memref<8x640xbf16, #tpu.memory_space<vmem>>, vector<8x384xbf16>
    tpu.vector_store %arg9[%c0_42, %c128], %62 {strides = array<i32>} : memref<8x640xbf16, #tpu.memory_space<vmem>>, vector<8x384xbf16>,
    %c0_43 = arith.constant 0 : index
    %c0_44 = arith.constant 0 : index
    %64 = vector.load %arg9[%c0_43, %c0_44] : memref<8x640xbf16, #tpu.memory_space<vmem>>, vector<8x640xbf16>
    %c0_45 = arith.constant 0 : index
    %c0_46 = arith.constant 0 : index
    %65 = vector.load %arg5[%c0_45, %c0_46] : memref<16x1xf32, #tpu.memory_space<vmem>>, vector<16x1xf32>
    %66 = vector.shape_cast %65 : vector<16x1xf32> to vector<16x1xf32>
    %67 = vector.broadcast %66 : vector<16x1xf32> to vector<16x384xf32>
    %c0_47 = arith.constant 0 : index
    %c0_48 = arith.constant 0 : index
    %c0_49 = arith.constant 0 : index
    %68 = vector.load %arg4[%c0_47, %c0_48, %c0_49] : memref<9x16x8xbf16, #tpu.memory_space<vmem>>, vector<1x16x8xbf16>
    %69 = vector.shape_cast %68 : vector<1x16x8xbf16> to vector<16x8xbf16>
    %70 = vector.extract_strided_slice %64 {offsets = [0, 109], sizes = [8, 384], strides = [1, 1]} : vector<8x640xbf16> to vector<8x384xbf16>
    %cst_50 = arith.constant dense<0.000000e+00> : vector<16x384xf32>
    %71 = tpu.matmul %69, %70, %cst_50 {dimension_numbers = #tpu.dot_dimension_numbers<[1], [0], [0], [1], [0, 0, 1, 1], [], []>} : vector<16x8xbf16>, vector<8x384xbf16>, vector<16x384xf32> -> vector<16x384xf32>
    %72 = arith.addf %67, %71 : vector<16x384xf32>
    %c1_51 = arith.constant 1 : index
    %c0_52 = arith.constant 0 : index
    %c0_53 = arith.constant 0 : index
    %73 = vector.load %arg4[%c1_51, %c0_52, %c0_53] : memref<9x16x8xbf16, #tpu.memory_space<vmem>>, vector<1x16x8xbf16>
    %74 = vector.shape_cast %73 : vector<1x16x8xbf16> to vector<16x8xbf16>
    %75 = vector.extract_strided_slice %64 {offsets = [0, 110], sizes = [8, 384], strides = [1, 1]} : vector<8x640xbf16> to vector<8x384xbf16>
    %cst_54 = arith.constant dense<0.000000e+00> : vector<16x384xf32>
    %76 = tpu.matmul %74, %75, %cst_54 {dimension_numbers = #tpu.dot_dimension_numbers<[1], [0], [0], [1], [0, 0, 1, 1], [], []>} : vector<16x8xbf16>, vector<8x384xbf16>, vector<16x384xf32> -> vector<16x384xf32>
    %77 = arith.addf %72, %76 : vector<16x384xf32>
    %c2_55 = arith.constant 2 : index
    %c0_56 = arith.constant 0 : index
    %c0_57 = arith.constant 0 : index
    %78 = vector.load %arg4[%c2_55, %c0_56, %c0_57] : memref<9x16x8xbf16, #tpu.memory_space<vmem>>, vector<1x16x8xbf16>
    %79 = vector.shape_cast %78 : vector<1x16x8xbf16> to vector<16x8xbf16>
    %80 = vector.extract_strided_slice %64 {offsets = [0, 111], sizes = [8, 384], strides = [1, 1]} : vector<8x640xbf16> to vector<8x384xbf16>
    %cst_58 = arith.constant dense<0.000000e+00> : vector<16x384xf32>
    %81 = tpu.matmul %79, %80, %cst_58 {dimension_numbers = #tpu.dot_dimension_numbers<[1], [0], [0], [1], [0, 0, 1, 1], [], []>} : vector<16x8xbf16>, vector<8x384xbf16>, vector<16x384xf32> -> vector<16x384xf32>
    %82 = arith.addf %77, %81 : vector<16x384xf32>
    %c3_59 = arith.constant 3 : index
    %c0_60 = arith.constant 0 : index
    %c0_61 = arith.constant 0 : index
    %83 = vector.load %arg4[%c3_59, %c0_60, %c0_61] : memref<9x16x8xbf16, #tpu.memory_space<vmem>>, vector<1x16x8xbf16>
    %84 = vector.shape_cast %83 : vector<1x16x8xbf16> to vector<16x8xbf16>
    %85 = vector.extract_strided_slice %64 {offsets = [0, 127], sizes = [8, 384], strides = [1, 1]} : vector<8x640xbf16> to vector<8x384xbf16>
    %cst_62 = arith.constant dense<0.000000e+00> : vector<16x384xf32>
    %86 = tpu.matmul %84, %85, %cst_62 {dimension_numbers = #tpu.dot_dimension_numbers<[1], [0], [0], [1], [0, 0, 1, 1], [], []>} : vector<16x8xbf16>, vector<8x384xbf16>, vector<16x384xf32> -> vector<16x384xf32>
    %87 = arith.addf %82, %86 : vector<16x384xf32>
    %c4_63 = arith.constant 4 : index
    %c0_64 = arith.constant 0 : index
    %c0_65 = arith.constant 0 : index
    %88 = vector.load %arg4[%c4_63, %c0_64, %c0_65] : memref<9x16x8xbf16, #tpu.memory_space<vmem>>, vector<1x16x8xbf16>
    %89 = vector.shape_cast %88 : vector<1x16x8xbf16> to vector<16x8xbf16>
    %90 = vector.extract_strided_slice %64 {offsets = [0, 128], sizes = [8, 384], strides = [1, 1]} : vector<8x640xbf16> to vector<8x384xbf16>
    %cst_66 = arith.constant dense<0.000000e+00> : vector<16x384xf32>
    %91 = tpu.matmul %89, %90, %cst_66 {dimension_numbers = #tpu.dot_dimension_numbers<[1], [0], [0], [1], [0, 0, 1, 1], [], []>} : vector<16x8xbf16>, vector<8x384xbf16>, vector<16x384xf32> -> vector<16x384xf32>
    %92 = arith.addf %87, %91 : vector<16x384xf32>
    %c5_67 = arith.constant 5 : index
    %c0_68 = arith.constant 0 : index
    %c0_69 = arith.constant 0 : index
    %93 = vector.load %arg4[%c5_67, %c0_68, %c0_69] : memref<9x16x8xbf16, #tpu.memory_space<vmem>>, vector<1x16x8xbf16>
    %94 = vector.shape_cast %93 : vector<1x16x8xbf16> to vector<16x8xbf16>
    %95 = vector.extract_strided_slice %64 {offsets = [0, 129], sizes = [8, 384], strides = [1, 1]} : vector<8x640xbf16> to vector<8x384xbf16>
    %cst_70 = arith.constant dense<0.000000e+00> : vector<16x384xf32>
    %96 = tpu.matmul %94, %95, %cst_70 {dimension_numbers = #tpu.dot_dimension_numbers<[1], [0], [0], [1], [0, 0, 1, 1], [], []>} : vector<16x8xbf16>, vector<8x384xbf16>, vector<16x384xf32> -> vector<16x384xf32>
    %97 = arith.addf %92, %96 : vector<16x384xf32>
    %c6_71 = arith.constant 6 : index
    %c0_72 = arith.constant 0 : index
    %c0_73 = arith.constant 0 : index
    %98 = vector.load %arg4[%c6_71, %c0_72, %c0_73] : memref<9x16x8xbf16, #tpu.memory_space<vmem>>, vector<1x16x8xbf16>
    %99 = vector.shape_cast %98 : vector<1x16x8xbf16> to vector<16x8xbf16>
    %100 = vector.extract_strided_slice %64 {offsets = [0, 145], sizes = [8, 384], strides = [1, 1]} : vector<8x640xbf16> to vector<8x384xbf16>
    %cst_74 = arith.constant dense<0.000000e+00> : vector<16x384xf32>
    %101 = tpu.matmul %99, %100, %cst_74 {dimension_numbers = #tpu.dot_dimension_numbers<[1], [0], [0], [1], [0, 0, 1, 1], [], []>} : vector<16x8xbf16>, vector<8x384xbf16>, vector<16x384xf32> -> vector<16x384xf32>
    %102 = arith.addf %97, %101 : vector<16x384xf32>
    %c7_75 = arith.constant 7 : index
    %c0_76 = arith.constant 0 : index
    %c0_77 = arith.constant 0 : index
    %103 = vector.load %arg4[%c7_75, %c0_76, %c0_77] : memref<9x16x8xbf16, #tpu.memory_space<vmem>>, vector<1x16x8xbf16>
    %104 = vector.shape_cast %103 : vector<1x16x8xbf16> to vector<16x8xbf16>
    %105 = vector.extract_strided_slice %64 {offsets = [0, 146], sizes = [8, 384], strides = [1, 1]} : vector<8x640xbf16> to vector<8x384xbf16>
    %cst_78 = arith.constant dense<0.000000e+00> : vector<16x384xf32>
    %106 = tpu.matmul %104, %105, %cst_78 {dimension_numbers = #tpu.dot_dimension_numbers<[1], [0], [0], [1], [0, 0, 1, 1], [], []>} : vector<16x8xbf16>, vector<8x384xbf16>, vector<16x384xf32> -> vector<16x384xf32>
    %107 = arith.addf %102, %106 : vector<16x384xf32>
    %c8_79 = arith.constant 8 : index
    %c0_80 = arith.constant 0 : index
    %c0_81 = arith.constant 0 : index
    %108 = vector.load %arg4[%c8_79, %c0_80, %c0_81] : memref<9x16x8xbf16, #tpu.memory_space<vmem>>, vector<1x16x8xbf16>
    %109 = vector.shape_cast %108 : vector<1x16x8xbf16> to vector<16x8xbf16>
    %110 = vector.extract_strided_slice %64 {offsets = [0, 147], sizes = [8, 384], strides = [1, 1]} : vector<8x640xbf16> to vector<8x384xbf16>
    %cst_82 = arith.constant dense<0.000000e+00> : vector<16x384xf32>
    %111 = tpu.matmul %109, %110, %cst_82 {dimension_numbers = #tpu.dot_dimension_numbers<[1], [0], [0], [1], [0, 0, 1, 1], [], []>} : vector<16x8xbf16>, vector<8x384xbf16>, vector<16x384xf32> -> vector<16x384xf32>
    %112 = arith.addf %107, %111 : vector<16x384xf32>
    %cst_83 = arith.constant 0.000000e+00 : f32
    %113 = vector.broadcast %cst_83 : f32 to vector<16x384xf32>
    %114 = arith.maximumf %112, %113 : vector<16x384xf32>
    %c0_84 = arith.constant 0 : index
    %c0_85 = arith.constant 0 : index
    %c0_86 = arith.constant 0 : index
    %115 = vector.load %arg8[%c0_84, %c0_85, %c0_86] : memref<1x16x384xf32, #tpu.memory_space<vmem>>, vector<1x16x384xf32>
    %116 = vector.shape_cast %115 : vector<1x16x384xf32> to vector<16x384xf32>
    %117 = vector.shape_cast %114 : vector<16x384xf32> to vector<1x16x384xf32>
    tpu.vector_store %arg8[%c0_84, %c0_85, %c0_86], %117 {strides = array<i32>} : memref<1x16x384xf32, #tpu.memory_space<vmem>>, vector<1x16x384xf32>,
    return
  }
  func.func @transform_0(%arg0: i32) -> (i32, i32, i32) {
    %c0_i32 = arith.constant 0 : i32
    %c0_i32_0 = arith.constant 0 : i32
    %c0_i32_1 = arith.constant 0 : i32
    return %arg0, %c0_i32, %c0_i32_0 : i32, i32, i32
  }
  func.func @transform_1(%arg0: i32) -> (i32, i32, i32) {
    %c0_i32 = arith.constant 0 : i32
    %c0_i32_0 = arith.constant 0 : i32
    %c0_i32_1 = arith.constant 0 : i32
    %c0_i32_2 = arith.constant 0 : i32
    return %c0_i32, %c0_i32_0, %c0_i32_1 : i32, i32, i32
  }
  func.func @transform_2(%arg0: i32) -> (i32, i32) {
    %c0_i32 = arith.constant 0 : i32
    %c0_i32_0 = arith.constant 0 : i32
    %c0_i32_1 = arith.constant 0 : i32
    return %c0_i32, %c0_i32_0 : i32, i32
  }
  func.func @transform_3(%arg0: i32) -> (i32, i32, i32) {
    %c0_i32 = arith.constant 0 : i32
    %c0_i32_0 = arith.constant 0 : i32
    %c0_i32_1 = arith.constant 0 : i32
    %c0_i32_2 = arith.constant 0 : i32
    return %c0_i32, %c0_i32_0, %c0_i32_1 : i32, i32, i32
  }
  func.func @transform_4(%arg0: i32) -> (i32, i32) {
    %c0_i32 = arith.constant 0 : i32
    %c0_i32_0 = arith.constant 0 : i32
    %c0_i32_1 = arith.constant 0 : i32
    return %c0_i32, %c0_i32_0 : i32, i32
  }
  func.func @transform_5(%arg0: i32) -> (i32, i32) {
    %c0_i32 = arith.constant 0 : i32
    %c0_i32_0 = arith.constant 0 : i32
    %c0_i32_1 = arith.constant 0 : i32
    return %c0_i32, %c0_i32_0 : i32, i32
  }
  func.func @transform_6(%arg0: i32) -> (i32, i32, i32) {
    %c0_i32 = arith.constant 0 : i32
    %c0_i32_0 = arith.constant 0 : i32
    %c0_i32_1 = arith.constant 0 : i32
    return %arg0, %c0_i32, %c0_i32_0 : i32, i32, i32
  }
  func.func @transform_7(%arg0: i32) -> (i32, i32, i32) {
    %c0_i32 = arith.constant 0 : i32
    %c0_i32_0 = arith.constant 0 : i32
    %c0_i32_1 = arith.constant 0 : i32
    return %arg0, %c0_i32, %c0_i32_0 : i32, i32, i32
  }
}

</mosaic_0001>

<llo_original>
// kernel: _fused_feature_forward.1
$region0: #{_fused_feature_forward.1}
  #allocation0 [shape = 'u32[]', space=smem, size = 0x4, offset = 0x4, fixed_abs, tag = 'smem constant byte address 0x4 - core index']
  #allocation1 [shape = 'u32[144,128]{1,0:T(1,128)}', space=vmem, size = 0x12000, scoped, tag = 'internal scratch']
  #allocation2 [shape = 'bf16[8,640]{1,0:T(8,128)(2,1)}', space=vmem, size = 0x2800, scoped, tag = 'scratch operand']
  %s0 = inlined_call_operand.vmem [shape: bf16[2,8,512], index: 0, kind: input, shape index: {}]
  %s1 = inlined_call_operand.vmem [shape: bf16[9,8,8], index: 1, kind: input, shape index: {}]
  %s2 = inlined_call_operand.vmem [shape: f32[8,1], index: 2, kind: input, shape index: {}]
  %s3 = inlined_call_operand.vmem [shape: bf16[9,16,8], index: 3, kind: input, shape index: {}]
  %s4 = inlined_call_operand.vmem [shape: f32[16,1], index: 4, kind: input, shape index: {}]
  %s5 = inlined_call_operand.vmem [shape: f32[1,384], index: 5, kind: input, shape index: {}]
  %s6 = inlined_call_operand.vmem [shape: f32[2,8,384], index: 6, kind: output, shape index: {0}]
  %s7 = inlined_call_operand.vmem [shape: f32[2,16,384], index: 7, kind: output, shape index: {1}]
  %8 = xla_tuple %s6, %s7
  %s9 = sld [smem:[#allocation0]]
  $region65: #{_fused_feature_forward.1} parent=0
    _
  %s11 = ssub.s32 1, %s9
  %s12 = scalar_select 0, %s11, %s9
  loop: start=0, step=1, limit=4
  $region2: #{_fused_feature_forward.1} parent=0 // loop_pre_header
    _
  $region3: #{_fused_feature_forward.1} parent=0 // loop_header
    %s14 = sphi 0, %s18
    %p15 = scmp.ge.s32.totalorder %s14, 4
    %s24 = sphi 0, %s26
    %s27 = sphi 0, %s24
    %s28 = sphi 0, %s27
    %s44 = sphi 0, %s28
    %s48 = sphi 0, %s48
    %s50 = sphi 0, %s48
    %s51 = sphi 0, %s50
    %s65 = sphi 0, %s51
    %s69 = sphi 0, %s69
    %s71 = sphi 0, %s69
    %s72 = sphi 0, %s71
    %s86 = sphi 0, %s72
    %s90 = sphi 0, %s90
    %s92 = sphi 0, %s90
    %s93 = sphi 0, %s92
    %s107 = sphi 0, %s93
    %s111 = sphi 0, %s111
    %s113 = sphi 0, %s111
    %s114 = sphi 0, %s113
    %s128 = sphi 0, %s114
    %s132 = sphi 0, %s132
    %s134 = sphi 0, %s132
    %s135 = sphi 0, %s134
    %s149 = sphi 0, %s135
    %s155 = sphi 0, %s157
    %s158 = sphi 0, %s155
    %s159 = sphi 0, %s158
    %s175 = sphi 0, %s159
    %s181 = sphi 0, %s183
    %s184 = sphi 0, %s181
    %s185 = sphi 0, %s184
    %s201 = sphi 0, %s185
  $region4: #{_fused_feature_forward.1} parent=0 // loop_header_branch
    %17 = sbr.rel (%p15) target = $region8
  $region5: #{_fused_feature_forward.1} parent=0 // loop_body
    %s19 = ssub.s32 %s14, 1
    %s20 = ssub.s32 %s14, 2
    %s21 = sadd.s32 %s14, 1
    %s22 = ssub.s32 %s14, %s21
    %p23 = scmp.eq.s32.totalorder %s22, 0
    %s25 = sadd.s32 %s24, 1
    %s26 = scalar_select %p23, %s24, %s25
    %p29 = pneg %p23
    %p30 = scmp.eq.s32.totalorder %s14, 1
    %p31 = por %p29, %p30
    %p32 = scmp.ne.s32.totalorder %s24, %s27
    %p33 = scmp.eq.s32.totalorder %s14, 0
    %p34 = por %p32, %p33
    %p35 = scmp.ne.s32.totalorder %s24, %s27
    %p36 = scmp.eq.s32.totalorder %s19, 1
    %p37 = por %p35, %p36
    %p38 = scmp.ne.s32.totalorder %s27, %s28
    %p39 = scmp.eq.s32.totalorder %s19, 0
    %p40 = por %p38, %p39
    %p41 = scmp.ne.s32.totalorder %s27, %s28
    %p42 = scmp.eq.s32.totalorder %s20, 1
    %p43 = por %p41, %p42
    %p45 = scmp.ne.s32.totalorder %s28, %s44
    %p46 = scmp.eq.s32.totalorder %s20, 0
    %p47 = por %p45, %p46
    %s49 = sadd.s32 %s48, 1
    %p52 = scmp.eq.s32.totalorder %s14, 1
    %p53 = scmp.ne.s32.totalorder %s48, %s50
    %p54 = scmp.eq.s32.totalorder %s14, 0
    %p55 = por %p53, %p54
    %p56 = scmp.ne.s32.totalorder %s48, %s50
    %p57 = scmp.eq.s32.totalorder %s19, 1
    %p58 = por %p56, %p57
    %p59 = scmp.ne.s32.totalorder %s50, %s51
    %p60 = scmp.eq.s32.totalorder %s19, 0
    %p61 = por %p59, %p60
    %p62 = scmp.ne.s32.totalorder %s50, %s51
    %p63 = scmp.eq.s32.totalorder %s20, 1
    %p64 = por %p62, %p63
    %p66 = scmp.ne.s32.totalorder %s51, %s65
    %p67 = scmp.eq.s32.totalorder %s20, 0
    %p68 = por %p66, %p67
    %s70 = sadd.s32 %s69, 1
    %p73 = scmp.eq.s32.totalorder %s14, 1
    %p74 = scmp.ne.s32.totalorder %s69, %s71
    %p75 = scmp.eq.s32.totalorder %s14, 0
    %p76 = por %p74, %p75
    %p77 = scmp.ne.s32.totalorder %s69, %s71
    %p78 = scmp.eq.s32.totalorder %s19, 1
    %p79 = por %p77, %p78
    %p80 = scmp.ne.s32.totalorder %s71, %s72
    %p81 = scmp.eq.s32.totalorder %s19, 0
    %p82 = por %p80, %p81
    %p83 = scmp.ne.s32.totalorder %s71, %s72
    %p84 = scmp.eq.s32.totalorder %s20, 1
    %p85 = por %p83, %p84
    %p87 = scmp.ne.s32.totalorder %s72, %s86
    %p88 = scmp.eq.s32.totalorder %s20, 0
    %p89 = por %p87, %p88
    %s91 = sadd.s32 %s90, 1
    %p94 = scmp.eq.s32.totalorder %s14, 1
    %p95 = scmp.ne.s32.totalorder %s90, %s92
    %p96 = scmp.eq.s32.totalorder %s14, 0
    %p97 = por %p95, %p96
    %p98 = scmp.ne.s32.totalorder %s90, %s92
    %p99 = scmp.eq.s32.totalorder %s19, 1
    %p100 = por %p98, %p99
    %p101 = scmp.ne.s32.totalorder %s92, %s93
    %p102 = scmp.eq.s32.totalorder %s19, 0
    %p103 = por %p101, %p102
    %p104 = scmp.ne.s32.totalorder %s92, %s93
    %p105 = scmp.eq.s32.totalorder %s20, 1
    %p106 = por %p104, %p105
    %p108 = scmp.ne.s32.totalorder %s93, %s107
    %p109 = scmp.eq.s32.totalorder %s20, 0
    %p110 = por %p108, %p109
    %s112 = sadd.s32 %s111, 1
    %p115 = scmp.eq.s32.totalorder %s14, 1
    %p116 = scmp.ne.s32.totalorder %s111, %s113
    %p117 = scmp.eq.s32.totalorder %s14, 0
    %p118 = por %p116, %p117
    %p119 = scmp.ne.s32.totalorder %s111, %s113
    %p120 = scmp.eq.s32.totalorder %s19, 1
    %p121 = por %p119, %p120
    %p122 = scmp.ne.s32.totalorder %s113, %s114
    %p123 = scmp.eq.s32.totalorder %s19, 0
    %p124 = por %p122, %p123
    %p125 = scmp.ne.s32.totalorder %s113, %s114
    %p126 = scmp.eq.s32.totalorder %s20, 1
    %p127 = por %p125, %p126
    %p129 = scmp.ne.s32.totalorder %s114, %s128
    %p130 = scmp.eq.s32.totalorder %s20, 0
    %p131 = por %p129, %p130
    %s133 = sadd.s32 %s132, 1
    %p136 = scmp.eq.s32.totalorder %s14, 1
    %p137 = scmp.ne.s32.totalorder %s132, %s134
    %p138 = scmp.eq.s32.totalorder %s14, 0
    %p139 = por %p137, %p138
    %p140 = scmp.ne.s32.totalorder %s132, %s134
    %p141 = scmp.eq.s32.totalorder %s19, 1
    %p142 = por %p140, %p141
    %p143 = scmp.ne.s32.totalorder %s134, %s135
    %p144 = scmp.eq.s32.totalorder %s19, 0
    %p145 = por %p143, %p144
    %p146 = scmp.ne.s32.totalorder %s134, %s135
    %p147 = scmp.eq.s32.totalorder %s20, 1
    %p148 = por %p146, %p147
    %p150 = scmp.ne.s32.totalorder %s135, %s149
    %p151 = scmp.eq.s32.totalorder %s20, 0
    %p152 = por %p150, %p151
    %s153 = ssub.s32 %s14, %s21
    %p154 = scmp.eq.s32.totalorder %s153, 0
    %s156 = sadd.s32 %s155, 1
    %s157 = scalar_select %p154, %s155, %s156
    %p160 = pneg %p154
    %p161 = scmp.eq.s32.totalorder %s14, 1
    %p162 = por %p160, %p161
    %p163 = scmp.ne.s32.totalorder %s155, %s158
    %p164 = scmp.eq.s32.totalorder %s14, 0
    %p165 = por %p163, %p164
    %p166 = scmp.ne.s32.totalorder %s155, %s158
    %p167 = scmp.eq.s32.totalorder %s19, 1
    %p168 = por %p166, %p167
    %p169 = scmp.ne.s32.totalorder %s158, %s159
    %p170 = scmp.eq.s32.totalorder %s19, 0
    %p171 = por %p169, %p170
    %p172 = scmp.ne.s32.totalorder %s158, %s159
    %p173 = scmp.eq.s32.totalorder %s20, 1
    %p174 = por %p172, %p173
    %p176 = scmp.ne.s32.totalorder %s159, %s175
    %p177 = scmp.eq.s32.totalorder %s20, 0
    %p178 = por %p176, %p177
    %s179 = ssub.s32 %s14, %s21
    %p180 = scmp.eq.s32.totalorder %s179, 0
    %s182 = sadd.s32 %s181, 1
    %s183 = scalar_select %p180, %s181, %s182
    %p186 = pneg %p180
    %p187 = scmp.eq.s32.totalorder %s14, 1
    %p188 = por %p186, %p187
    %p189 = scmp.ne.s32.totalorder %s181, %s184
    %p190 = scmp.eq.s32.totalorder %s14, 0
    %p191 = por %p189, %p190
    %p192 = scmp.ne.s32.totalorder %s181, %s184
    %p193 = scmp.eq.s32.totalorder %s19, 1
    %p194 = por %p192, %p193
    %p195 = scmp.ne.s32.totalorder %s184, %s185
    %p196 = scmp.eq.s32.totalorder %s19, 0
    %p197 = por %p195, %p196
    %p198 = scmp.ne.s32.totalorder %s184, %s185
    %p199 = scmp.eq.s32.totalorder %s20, 1
    %p200 = por %p198, %p199
    %p202 = scmp.ne.s32.totalorder %s185, %s201
    %p203 = scmp.eq.s32.totalorder %s20, 0
    %p204 = por %p202, %p203
    %p205 = scmp.le.s32.totalorder 1, %s14
    %p206 = scmp.lt.s32.totalorder %s14, 3
    %p207 = pnand %p205, %p206
    %p208 = pneg %p207
    // Predicated region
    $region9: #{_fused_feature_forward.1} parent=5 // pred_check
      _
    $region10: #{_fused_feature_forward.1} parent=5 // pred_check_branch
      %210 = sbr.rel (%p207) target = $region12
    $region11: #{_fused_feature_forward.1} parent=5 // pred_region
      %s211 = ssub.s32 %s14, 1
      // Predicated region
      $region13: #{_fused_feature_forward.1} parent=11 // pred_check
        %p212 = pneg %p61
      $region14: #{_fused_feature_forward.1} parent=11 // pred_check_branch
        %214 = sbr.rel (%p212) target = $region16
      $region15: #{_fused_feature_forward.1} parent=11 // pred_region
        _
      $region16: #{_fused_feature_forward.1} parent=11 // pred_fallthru
        _
      // Predicated region
      $region17: #{_fused_feature_forward.1} parent=11 // pred_check
        %p215 = pneg %p82
      $region18: #{_fused_feature_forward.1} parent=11 // pred_check_branch
        %217 = sbr.rel (%p215) target = $region20
      $region19: #{_fused_feature_forward.1} parent=11 // pred_region
        _
      $region20: #{_fused_feature_forward.1} parent=11 // pred_fallthru
        _
      // Predicated region
      $region21: #{_fused_feature_forward.1} parent=11 // pred_check
        %p218 = pneg %p103
      $region22: #{_fused_feature_forward.1} parent=11 // pred_check_branch
        %220 = sbr.rel (%p218) target = $region24
      $region23: #{_fused_feature_forward.1} parent=11 // pred_region
        _
      $region24: #{_fused_feature_forward.1} parent=11 // pred_fallthru
        _
      // Predicated region
      $region25: #{_fused_feature_forward.1} parent=11 // pred_check
        %p221 = pneg %p124
      $region26: #{_fused_feature_forward.1} parent=11 // pred_check_branch
        %223 = sbr.rel (%p221) target = $region28
      $region27: #{_fused_feature_forward.1} parent=11 // pred_region
        _
      $region28: #{_fused_feature_forward.1} parent=11 // pred_fallthru
        _
      // Predicated region
      $region29: #{_fused_feature_forward.1} parent=11 // pred_check
        %p224 = pneg %p145
      $region30: #{_fused_feature_forward.1} parent=11 // pred_check_branch
        %226 = sbr.rel (%p224) target = $region32
      $region31: #{_fused_feature_forward.1} parent=11 // pred_region
        _
      $region32: #{_fused_feature_forward.1} parent=11 // pred_fallthru
        _
    $region12: #{_fused_feature_forward.1} parent=5 // pred_fallthru
      _
    %p227 = scmp.lt.s32.totalorder %s14, 2
    // Predicated region
    $region33: #{_fused_feature_forward.1} parent=5 // pred_check
      %p228 = pneg %p227
    $region34: #{_fused_feature_forward.1} parent=5 // pred_check_branch
      %230 = sbr.rel (%p228) target = $region36
    $region35: #{_fused_feature_forward.1} parent=5 // pred_region
      // Predicated region
      $region37: #{_fused_feature_forward.1} parent=35 // pred_check
        %p231 = pneg %p34
      $region38: #{_fused_feature_forward.1} parent=35 // pred_check_branch
        %233 = sbr.rel (%p231) target = $region40
      $region39: #{_fused_feature_forward.1} parent=35 // pred_region
        %p234 = scmp.lt.s32.totalorder %s14, 1
        %s235 = scalar_select %p234, %s14, 1
        %s236 = smul.addr %s235, 4
        %s237 = smul.addr %s236, 4
        %s238 = scalar_lea.vmem %s0, %s237
      $region40: #{_fused_feature_forward.1} parent=35 // pred_fallthru
        _
    $region36: #{_fused_feature_forward.1} parent=5 // pred_fallthru
      _
    %p239 = scmp.le.s32.totalorder 1, %s14
    %p240 = scmp.lt.s32.totalorder %s14, 3
    %p241 = pnand %p239, %p240
    %p242 = pneg %p241
    // Predicated region
    $region41: #{_fused_feature_forward.1} parent=5 // pred_check
      _
    $region42: #{_fused_feature_forward.1} parent=5 // pred_check_branch
      %244 = sbr.rel (%p241) target = $region44
    $region43: #{_fused_feature_forward.1} parent=5 // pred_region
      %s245 = ssub.s32 %s14, 1
      %p246 = scmp.lt.s32.totalorder %s19, 1
      %s247 = scalar_select %p246, %s19, 1
      %s248 = smul.addr %s247, 4
      %s249 = smul.addr %s248, 4
      %s250 = scalar_lea.vmem %s0, %s249
      %p251 = pneg %p40
      %p252 = pneg %p37
      %p253 = pneg %p61
      %p254 = pneg %p58
      %p255 = pneg %p82
      %p256 = pneg %p79
      %p257 = pneg %p103
      %p258 = pneg %p100
      %p259 = pneg %p124
      %p260 = pneg %p121
      %p261 = pneg %p145
      %p262 = pneg %p142
      %p263 = pneg %p171
      %p264 = pneg %p168
      %p265 = scmp.lt.s32.totalorder %s19, 1
      %s266 = scalar_select %p265, %s19, 1
      %s267 = smul.addr %s266, 3
      %s268 = smul.addr %s267, 8
      %s269 = scalar_lea.vmem %s6, %s268
      %p270 = pneg %p197
      %p271 = pneg %p194
      %p272 = scmp.lt.s32.totalorder %s19, 1
      %s273 = scalar_select %p272, %s19, 1
      %s274 = smul.addr %s273, 6
      %s275 = smul.addr %s274, 8
      %s276 = scalar_lea.vmem %s7, %s275
      %p277 = scmp.lt.s32.totalorder %s19, 1
      %s278 = scalar_select %p277, %s19, 1
      %s279 = smul.addr %s278, 4
      %s280 = smul.addr %s279, 4
      %s281 = scalar_lea.vmem %s0, %s280
      %p282 = scmp.lt.s32.totalorder %s19, 1
      %s283 = scalar_select %p282, %s19, 1
      %s284 = smul.addr %s283, 3
      %s285 = smul.addr %s284, 8
      %s286 = scalar_lea.vmem %s6, %s285
      %p287 = scmp.lt.s32.totalorder %s19, 1
      %s288 = scalar_select %p287, %s19, 1
      %s289 = smul.addr %s288, 6
      %s290 = smul.addr %s289, 8
      %s291 = scalar_lea.vmem %s7, %s290
      %v293 = vld [vmem:[%s281] sm:$0xff]
      %v294 = vld [vmem:[%s281 + $0x8] sm:$0xff]
      %v295 = vld [vmem:[%s2] sm:$0xff]
      %297 = vset.pattern.permute.xlu0 0
      %298 = vperm.xlu0 %297, %v295
      %v299 = vpop.permute.xlu0 %298
      %v301 = vld [vmem:[%s1] sm:$0xf]
      %v304 = vunpack.c.l.b16 %v293
      %v305 = vunpack.c.h.b16 %v293
      %v306 = vunpack.c.l.b16 %v294
      %v307 = vpack.c.b16 %v304, %v304
      %v308 = vpack.c.b16 %v305, %v305
      %v309 = vpack.c.b16 %v306, %v306
      %vm310 = vcmask 64512
      %v312 = vsel %vm310, %v301, 0
      %vm314 = vcmask 1043456
      %v316 = vsel %vm314, %v307, 0
      %v319 = vsel %vm314, %v308, 0
      %v322 = vsel %vm314, %v309, 0
      %324 = vmatprep.subr.bf16.mxu0 0
      %325 = vmatpush1.bf16.msra.mxu0 0
      %326 = vmatprep.subr.bf16.mxu0 0
      %327 = vmatpush1.bf16.msra.mxu0 0
      %328 = vmatprep.subr.bf16.mxu0 0
      %329 = vmatpush1.bf16.msra.mxu0 0
      %330 = vmatprep.subr.bf16.mxu0 0
      %331 = vmatpush1.bf16.msra.mxu0 0
      %332 = vmatprep.subr.bf16.mxu0 0
      %333 = vmatpush1.bf16.msra.mxu0 0
      %334 = vmatprep.subr.bf16.mxu0 0
      %335 = vmatpush1.bf16.msra.mxu0 0
      %336 = vmatprep.subr.bf16.mxu0 0
      %337 = vmatpush1.bf16.msra.mxu0 0
      %338 = vmatprep.subr.bf16.mxu0 %v319
      %339 = vmatpush1.bf16.msra.mxu0 %v316
      %340 = vmatprep.subr.bf16.mxu0 0
      %341 = vmatpush2.bf16.msra.mxu0 0
      %342 = vmatprep.subr.bf16.mxu0 0
      %343 = vmatpush2.bf16.msra.mxu0 0
      %344 = vmatprep.subr.bf16.mxu0 0
      %345 = vmatpush2.bf16.msra.mxu0 0
      %346 = vmatprep.subr.bf16.mxu0 0
      %347 = vmatpush2.bf16.msra.mxu0 0
      %348 = vmatprep.subr.bf16.mxu0 0
      %349 = vmatpush2.bf16.msra.mxu0 0
      %350 = vmatprep.subr.bf16.mxu0 0
      %351 = vmatpush2.bf16.msra.mxu0 0
      %352 = vmatprep.subr.bf16.mxu0 0
      %353 = vmatpush2.bf16.msra.mxu0 0
      %354 = vmatprep.subr.bf16.mxu0 0
      %355 = vmatpush2.bf16.msra.mxu0 0
      %356 = vmatprep.mubr.bf16.mxu0 0
      %357 = vmatmul.mubr.bf16.gmra.mxu0 %v312
      %v358 = vpop.f32.mrf.mxu0
      %v359 = vadd.f32 0.0, %v358
      %v360 = vpop.f32.mrf.mxu0
      %v361 = vadd.f32 0.0, %v360
      %v362 = vpop.f32.mrf.mxu0
      %v363 = vpop.f32.mrf.mxu0
      %364 = vdwg.mxu0
      %365 = vmatprep.subr.bf16.mxu0 0
      %366 = vmatpush1.bf16.msra.mxu0 0
      %367 = vmatprep.subr.bf16.mxu0 0
      %368 = vmatpush1.bf16.msra.mxu0 0
      %369 = vmatprep.subr.bf16.mxu0 0
      %370 = vmatpush1.bf16.msra.mxu0 0
      %371 = vmatprep.subr.bf16.mxu0 0
      %372 = vmatpush1.bf16.msra.mxu0 0
      %373 = vmatprep.subr.bf16.mxu0 0
      %374 = vmatpush1.bf16.msra.mxu0 0
      %375 = vmatprep.subr.bf16.mxu0 0
      %376 = vmatpush1.bf16.msra.mxu0 0
      %377 = vmatprep.subr.bf16.mxu0 0
      %378 = vmatpush1.bf16.msra.mxu0 0
      %379 = vmatprep.subr.bf16.mxu0 0
      %380 = vmatpush1.bf16.msra.mxu0 %v322
      %381 = vmatprep.subr.bf16.mxu0 0
      %382 = vmatpush2.bf16.msra.mxu0 0
      %383 = vmatprep.subr.bf16.mxu0 0
      %384 = vmatpush2.bf16.msra.mxu0 0
      %385 = vmatprep.subr.bf16.mxu0 0
      %386 = vmatpush2.bf16.msra.mxu0 0
      %387 = vmatprep.subr.bf16.mxu0 0
      %388 = vmatpush2.bf16.msra.mxu0 0
      %389 = vmatprep.subr.bf16.mxu0 0
      %390 = vmatpush2.bf16.msra.mxu0 0
      %391 = vmatprep.subr.bf16.mxu0 0
      %392 = vmatpush2.bf16.msra.mxu0 0
      %393 = vmatprep.subr.bf16.mxu0 0
      %394 = vmatpush2.bf16.msra.mxu0 0
      %395 = vmatprep.subr.bf16.mxu0 0
      %396 = vmatpush2.bf16.msra.mxu0 0
      %397 = vmatprep.mubr.bf16.mxu0 0
      %398 = vmatmul.mubr.bf16.gmra.mxu0 %v312
      %v399 = vpop.f32.mrf.mxu0
      %v400 = vadd.f32 0.0, %v399
      %v401 = vpop.f32.mrf.mxu0
      %v402 = vpop.f32.mrf.mxu0
      %v403 = vpop.f32.mrf.mxu0
      %404 = vdwg.mxu0
      %v405 = vadd.f32 %v299, %v359
      %v406 = vadd.f32 %v299, %v361
      %v407 = vadd.f32 %v299, %v400
      %s408 = scalar_lea.vmem %s1, 4
      %v409 = vld [vmem:[%s408] sm:$0xf]
      %v410 = vunpack.c.h.b16 %v294
      %v411 = vpack.c.b16 %v410, %v410
      %412 = vrot.lane.b32.xlu0 %v307, 127
      %v413 = vpop.permute.xlu0 %412
      %414 = vrot.lane.b32.xlu0 %v308, 127
      %v415 = vpop.permute.xlu0 %414
      %416 = vrot.lane.b32.xlu0 %v309, 127
      %v417 = vpop.permute.xlu0 %416
      %418 = vrot.lane.b32.xlu0 %v411, 127
      %v419 = vpop.permute.xlu0 %418
      %vm420 = vcmask 1039360
      %v421 = vsel %vm420, %v413, %v415
      %v422 = vsel %vm420, %v415, %v417
      %v423 = vsel %vm420, %v417, %v419
      %v425 = vsel %vm310, %v409, 0
      %v428 = vsel %vm314, %v421, 0
      %v431 = vsel %vm314, %v422, 0
      %v434 = vsel %vm314, %v423, 0
      %436 = vmatprep.subr.bf16.mxu0 0
      %437 = vmatpush1.bf16.msra.mxu0 0
      %438 = vmatprep.subr.bf16.mxu0 0
      %439 = vmatpush1.bf16.msra.mxu0 0
      %440 = vmatprep.subr.bf16.mxu0 0
      %441 = vmatpush1.bf16.msra.mxu0 0
      %442 = vmatprep.subr.bf16.mxu0 0
      %443 = vmatpush1.bf16.msra.mxu0 0
      %444 = vmatprep.subr.bf16.mxu0 0
      %445 = vmatpush1.bf16.msra.mxu0 0
      %446 = vmatprep.subr.bf16.mxu0 0
      %447 = vmatpush1.bf16.msra.mxu0 0
      %448 = vmatprep.subr.bf16.mxu0 0
      %449 = vmatpush1.bf16.msra.mxu0 0
      %450 = vmatprep.subr.bf16.mxu0 %v431
      %451 = vmatpush1.bf16.msra.mxu0 %v428
      %452 = vmatprep.subr.bf16.mxu0 0
      %453 = vmatpush2.bf16.msra.mxu0 0
      %454 = vmatprep.subr.bf16.mxu0 0
      %455 = vmatpush2.bf16.msra.mxu0 0
      %456 = vmatprep.subr.bf16.mxu0 0
      %457 = vmatpush2.bf16.msra.mxu0 0
      %458 = vmatprep.subr.bf16.mxu0 0
      %459 = vmatpush2.bf16.msra.mxu0 0
      %460 = vmatprep.subr.bf16.mxu0 0
      %461 = vmatpush2.bf16.msra.mxu0 0
      %462 = vmatprep.subr.bf16.mxu0 0
      %463 = vmatpush2.bf16.msra.mxu0 0
      %464 = vmatprep.subr.bf16.mxu0 0
      %465 = vmatpush2.bf16.msra.mxu0 0
      %466 = vmatprep.subr.bf16.mxu0 0
      %467 = vmatpush2.bf16.msra.mxu0 0
      %468 = vmatprep.mubr.bf16.mxu0 0
      %469 = vmatmul.mubr.bf16.gmra.mxu0 %v425
      %v470 = vpop.f32.mrf.mxu0
      %v471 = vadd.f32 0.0, %v470
      %v472 = vpop.f32.mrf.mxu0
      %v473 = vadd.f32 0.0, %v472
      %v474 = vpop.f32.mrf.mxu0
      %v475 = vpop.f32.mrf.mxu0
      %476 = vdwg.mxu0
      %477 = vmatprep.subr.bf16.mxu0 0
      %478 = vmatpush1.bf16.msra.mxu0 0
      %479 = vmatprep.subr.bf16.mxu0 0
      %480 = vmatpush1.bf16.msra.mxu0 0
      %481 = vmatprep.subr.bf16.mxu0 0
      %482 = vmatpush1.bf16.msra.mxu0 0
      %483 = vmatprep.subr.bf16.mxu0 0
      %484 = vmatpush1.bf16.msra.mxu0 0
      %485 = vmatprep.subr.bf16.mxu0 0
      %486 = vmatpush1.bf16.msra.mxu0 0
      %487 = vmatprep.subr.bf16.mxu0 0
      %488 = vmatpush1.bf16.msra.mxu0 0
      %489 = vmatprep.subr.bf16.mxu0 0
      %490 = vmatpush1.bf16.msra.mxu0 0
      %491 = vmatprep.subr.bf16.mxu0 0
      %492 = vmatpush1.bf16.msra.mxu0 %v434
      %493 = vmatprep.subr.bf16.mxu0 0
      %494 = vmatpush2.bf16.msra.mxu0 0
      %495 = vmatprep.subr.bf16.mxu0 0
      %496 = vmatpush2.bf16.msra.mxu0 0
      %497 = vmatprep.subr.bf16.mxu0 0
      %498 = vmatpush2.bf16.msra.mxu0 0
      %499 = vmatprep.subr.bf16.mxu0 0
      %500 = vmatpush2.bf16.msra.mxu0 0
      %501 = vmatprep.subr.bf16.mxu0 0
      %502 = vmatpush2.bf16.msra.mxu0 0
      %503 = vmatprep.subr.bf16.mxu0 0
      %504 = vmatpush2.bf16.msra.mxu0 0
      %505 = vmatprep.subr.bf16.mxu0 0
      %506 = vmatpush2.bf16.msra.mxu0 0
      %507 = vmatprep.subr.bf16.mxu0 0
      %508 = vmatpush2.bf16.msra.mxu0 0
      %509 = vmatprep.mubr.bf16.mxu0 0
      %510 = vmatmul.mubr.bf16.gmra.mxu0 %v425
      %v511 = vpop.f32.mrf.mxu0
      %v512 = vadd.f32 0.0, %v511
      %v513 = vpop.f32.mrf.mxu0
      %v514 = vpop.f32.mrf.mxu0
      %v515 = vpop.f32.mrf.mxu0
      %516 = vdwg.mxu0
      %v517 = vadd.f32 %v405, %v471
      %v518 = vadd.f32 %v406, %v473
      %v519 = vadd.f32 %v407, %v512
      %s520 = scalar_lea.vmem %s1, 8
      %v521 = vld [vmem:[%s520] sm:$0xf]
      %522 = vrot.lane.b32.xlu0 %v307, 126
      %v523 = vpop.permute.xlu0 %522
      %524 = vrot.lane.b32.xlu0 %v308, 126
      %v525 = vpop.permute.xlu0 %524
      %526 = vrot.lane.b32.xlu0 %v309, 126
      %v527 = vpop.permute.xlu0 %526
      %528 = vrot.lane.b32.xlu0 %v411, 126
      %v529 = vpop.permute.xlu0 %528
      %vm530 = vcmask 1031168
      %v531 = vsel %vm530, %v523, %v525
      %v532 = vsel %vm530, %v525, %v527
      %v533 = vsel %vm530, %v527, %v529
      %v535 = vsel %vm310, %v521, 0
      %v538 = vsel %vm314, %v531, 0
      %v541 = vsel %vm314, %v532, 0
      %v544 = vsel %vm314, %v533, 0
      %546 = vmatprep.subr.bf16.mxu0 0
      %547 = vmatpush1.bf16.msra.mxu0 0
      %548 = vmatprep.subr.bf16.mxu0 0
      %549 = vmatpush1.bf16.msra.mxu0 0
      %550 = vmatprep.subr.bf16.mxu0 0
      %551 = vmatpush1.bf16.msra.mxu0 0
      %552 = vmatprep.subr.bf16.mxu0 0
      %553 = vmatpush1.bf16.msra.mxu0 0
      %554 = vmatprep.subr.bf16.mxu0 0
      %555 = vmatpush1.bf16.msra.mxu0 0
      %556 = vmatprep.subr.bf16.mxu0 0
      %557 = vmatpush1.bf16.msra.mxu0 0
      %558 = vmatprep.subr.bf16.mxu0 0
      %559 = vmatpush1.bf16.msra.mxu0 0
      %560 = vmatprep.subr.bf16.mxu0 %v541
      %561 = vmatpush1.bf16.msra.mxu0 %v538
      %562 = vmatprep.subr.bf16.mxu0 0
      %563 = vmatpush2.bf16.msra.mxu0 0
      %564 = vmatprep.subr.bf16.mxu0 0
      %565 = vmatpush2.bf16.msra.mxu0 0
      %566 = vmatprep.subr.bf16.mxu0 0
      %567 = vmatpush2.bf16.msra.mxu0 0
      %568 = vmatprep.subr.bf16.mxu0 0
      %569 = vmatpush2.bf16.msra.mxu0 0
      %570 = vmatprep.subr.bf16.mxu0 0
      %571 = vmatpush2.bf16.msra.mxu0 0
      %572 = vmatprep.subr.bf16.mxu0 0
      %573 = vmatpush2.bf16.msra.mxu0 0
      %574 = vmatprep.subr.bf16.mxu0 0
      %575 = vmatpush2.bf16.msra.mxu0 0
      %576 = vmatprep.subr.bf16.mxu0 0
      %577 = vmatpush2.bf16.msra.mxu0 0
      %578 = vmatprep.mubr.bf16.mxu0 0
      %579 = vmatmul.mubr.bf16.gmra.mxu0 %v535
      %v580 = vpop.f32.mrf.mxu0
      %v581 = vadd.f32 0.0, %v580
      %v582 = vpop.f32.mrf.mxu0
      %v583 = vadd.f32 0.0, %v582
      %v584 = vpop.f32.mrf.mxu0
      %v585 = vpop.f32.mrf.mxu0
      %586 = vdwg.mxu0
      %587 = vmatprep.subr.bf16.mxu0 0
      %588 = vmatpush1.bf16.msra.mxu0 0
      %589 = vmatprep.subr.bf16.mxu0 0
      %590 = vmatpush1.bf16.msra.mxu0 0
      %591 = vmatprep.subr.bf16.mxu0 0
      %592 = vmatpush1.bf16.msra.mxu0 0
      %593 = vmatprep.subr.bf16.mxu0 0
      %594 = vmatpush1.bf16.msra.mxu0 0
      %595 = vmatprep.subr.bf16.mxu0 0
      %596 = vmatpush1.bf16.msra.mxu0 0
      %597 = vmatprep.subr.bf16.mxu0 0
      %598 = vmatpush1.bf16.msra.mxu0 0
      %599 = vmatprep.subr.bf16.mxu0 0
      %600 = vmatpush1.bf16.msra.mxu0 0
      %601 = vmatprep.subr.bf16.mxu0 0
      %602 = vmatpush1.bf16.msra.mxu0 %v544
      %603 = vmatprep.subr.bf16.mxu0 0
      %604 = vmatpush2.bf16.msra.mxu0 0
      %605 = vmatprep.subr.bf16.mxu0 0
      %606 = vmatpush2.bf16.msra.mxu0 0
      %607 = vmatprep.subr.bf16.mxu0 0
      %608 = vmatpush2.bf16.msra.mxu0 0
      %609 = vmatprep.subr.bf16.mxu0 0
      %610 = vmatpush2.bf16.msra.mxu0 0
      %611 = vmatprep.subr.bf16.mxu0 0
      %612 = vmatpush2.bf16.msra.mxu0 0
      %613 = vmatprep.subr.bf16.mxu0 0
      %614 = vmatpush2.bf16.msra.mxu0 0
      %615 = vmatprep.subr.bf16.mxu0 0
      %616 = vmatpush2.bf16.msra.mxu0 0
      %617 = vmatprep.subr.bf16.mxu0 0
      %618 = vmatpush2.bf16.msra.mxu0 0
      %619 = vmatprep.mubr.bf16.mxu0 0
      %620 = vmatmul.mubr.bf16.gmra.mxu0 %v535
      %v621 = vpop.f32.mrf.mxu0
      %v622 = vadd.f32 0.0, %v621
      %v623 = vpop.f32.mrf.mxu0
      %v624 = vpop.f32.mrf.mxu0
      %v625 = vpop.f32.mrf.mxu0
      %626 = vdwg.mxu0
      %v627 = vadd.f32 %v517, %v581
      %v628 = vadd.f32 %v518, %v583
      %v629 = vadd.f32 %v519, %v622
      %s630 = scalar_lea.vmem %s1, 12
      %v631 = vld [vmem:[%s630] sm:$0xf]
      %632 = vrot.lane.b32.xlu0 %v307, 110
      %v633 = vpop.permute.xlu0 %632
      %634 = vrot.lane.b32.xlu0 %v308, 110
      %v635 = vpop.permute.xlu0 %634
      %636 = vrot.lane.b32.xlu0 %v309, 110
      %v637 = vpop.permute.xlu0 %636
      %638 = vrot.lane.b32.xlu0 %v411, 110
      %v639 = vpop.permute.xlu0 %638
      %vm640 = vcmask 900096
      %v641 = vsel %vm640, %v633, %v635
      %v642 = vsel %vm640, %v635, %v637
      %v643 = vsel %vm640, %v637, %v639
      %v645 = vsel %vm310, %v631, 0
      %v648 = vsel %vm314, %v641, 0
      %v651 = vsel %vm314, %v642, 0
      %v654 = vsel %vm314, %v643, 0
      %656 = vmatprep.subr.bf16.mxu0 0
      %657 = vmatpush1.bf16.msra.mxu0 0
      %658 = vmatprep.subr.bf16.mxu0 0
      %659 = vmatpush1.bf16.msra.mxu0 0
      %660 = vmatprep.subr.bf16.mxu0 0
      %661 = vmatpush1.bf16.msra.mxu0 0
      %662 = vmatprep.subr.bf16.mxu0 0
      %663 = vmatpush1.bf16.msra.mxu0 0
      %664 = vmatprep.subr.bf16.mxu0 0
      %665 = vmatpush1.bf16.msra.mxu0 0
      %666 = vmatprep.subr.bf16.mxu0 0
      %667 = vmatpush1.bf16.msra.mxu0 0
      %668 = vmatprep.subr.bf16.mxu0 0
      %669 = vmatpush1.bf16.msra.mxu0 0
      %670 = vmatprep.subr.bf16.mxu0 %v651
      %671 = vmatpush1.bf16.msra.mxu0 %v648
      %672 = vmatprep.subr.bf16.mxu0 0
      %673 = vmatpush2.bf16.msra.mxu0 0
      %674 = vmatprep.subr.bf16.mxu0 0
      %675 = vmatpush2.bf16.msra.mxu0 0
      %676 = vmatprep.subr.bf16.mxu0 0
      %677 = vmatpush2.bf16.msra.mxu0 0
      %678 = vmatprep.subr.bf16.mxu0 0
      %679 = vmatpush2.bf16.msra.mxu0 0
      %680 = vmatprep.subr.bf16.mxu0 0
      %681 = vmatpush2.bf16.msra.mxu0 0
      %682 = vmatprep.subr.bf16.mxu0 0
      %683 = vmatpush2.bf16.msra.mxu0 0
      %684 = vmatprep.subr.bf16.mxu0 0
      %685 = vmatpush2.bf16.msra.mxu0 0
      %686 = vmatprep.subr.bf16.mxu0 0
      %687 = vmatpush2.bf16.msra.mxu0 0
      %688 = vmatprep.mubr.bf16.mxu0 0
      %689 = vmatmul.mubr.bf16.gmra.mxu0 %v645
      %v690 = vpop.f32.mrf.mxu0
      %v691 = vadd.f32 0.0, %v690
      %v692 = vpop.f32.mrf.mxu0
      %v693 = vadd.f32 0.0, %v692
      %v694 = vpop.f32.mrf.mxu0
      %v695 = vpop.f32.mrf.mxu0
      %696 = vdwg.mxu0
      %697 = vmatprep.subr.bf16.mxu0 0
      %698 = vmatpush1.bf16.msra.mxu0 0
      %699 = vmatprep.subr.bf16.mxu0 0
      %700 = vmatpush1.bf16.msra.mxu0 0
      %701 = vmatprep.subr.bf16.mxu0 0
      %702 = vmatpush1.bf16.msra.mxu0 0
      %703 = vmatprep.subr.bf16.mxu0 0
      %704 = vmatpush1.bf16.msra.mxu0 0
      %705 = vmatprep.subr.bf16.mxu0 0
      %706 = vmatpush1.bf16.msra.mxu0 0
      %707 = vmatprep.subr.bf16.mxu0 0
      %708 = vmatpush1.bf16.msra.mxu0 0
      %709 = vmatprep.subr.bf16.mxu0 0
      %710 = vmatpush1.bf16.msra.mxu0 0
      %711 = vmatprep.subr.bf16.mxu0 0
      %712 = vmatpush1.bf16.msra.mxu0 %v654
      %713 = vmatprep.subr.bf16.mxu0 0
      %714 = vmatpush2.bf16.msra.mxu0 0
      %715 = vmatprep.subr.bf16.mxu0 0
      %716 = vmatpush2.bf16.msra.mxu0 0
      %717 = vmatprep.subr.bf16.mxu0 0
      %718 = vmatpush2.bf16.msra.mxu0 0
      %719 = vmatprep.subr.bf16.mxu0 0
      %720 = vmatpush2.bf16.msra.mxu0 0
      %721 = vmatprep.subr.bf16.mxu0 0
      %722 = vmatpush2.bf16.msra.mxu0 0
      %723 = vmatprep.subr.bf16.mxu0 0
      %724 = vmatpush2.bf16.msra.mxu0 0
      %725 = vmatprep.subr.bf16.mxu0 0
      %726 = vmatpush2.bf16.msra.mxu0 0
      %727 = vmatprep.subr.bf16.mxu0 0
      %728 = vmatpush2.bf16.msra.mxu0 0
      %729 = vmatprep.mubr.bf16.mxu0 0
      %730 = vmatmul.mubr.bf16.gmra.mxu0 %v645
      %v731 = vpop.f32.mrf.mxu0
      %v732 = vadd.f32 0.0, %v731
      %v733 = vpop.f32.mrf.mxu0
      %v734 = vpop.f32.mrf.mxu0
      %v735 = vpop.f32.mrf.mxu0
      %736 = vdwg.mxu0
      %v737 = vadd.f32 %v627, %v691
      %v738 = vadd.f32 %v628, %v693
      %v739 = vadd.f32 %v629, %v732
      %s740 = scalar_lea.vmem %s1, 16
      %v741 = vld [vmem:[%s740] sm:$0xf]
      %742 = vrot.lane.b32.xlu0 %v307, 109
      %v743 = vpop.permute.xlu0 %742
      %744 = vrot.lane.b32.xlu0 %v308, 109
      %v745 = vpop.permute.xlu0 %744
      %746 = vrot.lane.b32.xlu0 %v309, 109
      %v747 = vpop.permute.xlu0 %746
      %748 = vrot.lane.b32.xlu0 %v411, 109
      %v749 = vpop.permute.xlu0 %748
      %vm750 = vcmask 891904
      %v751 = vsel %vm750, %v743, %v745
      %v752 = vsel %vm750, %v745, %v747
      %v753 = vsel %vm750, %v747, %v749
      %v755 = vsel %vm310, %v741, 0
      %v758 = vsel %vm314, %v751, 0
      %v761 = vsel %vm314, %v752, 0
      %v764 = vsel %vm314, %v753, 0
      %766 = vmatprep.subr.bf16.mxu0 0
      %767 = vmatpush1.bf16.msra.mxu0 0
      %768 = vmatprep.subr.bf16.mxu0 0
      %769 = vmatpush1.bf16.msra.mxu0 0
      %770 = vmatprep.subr.bf16.mxu0 0
      %771 = vmatpush1.bf16.msra.mxu0 0
      %772 = vmatprep.subr.bf16.mxu0 0
      %773 = vmatpush1.bf16.msra.mxu0 0
      %774 = vmatprep.subr.bf16.mxu0 0
      %775 = vmatpush1.bf16.msra.mxu0 0
      %776 = vmatprep.subr.bf16.mxu0 0
      %777 = vmatpush1.bf16.msra.mxu0 0
      %778 = vmatprep.subr.bf16.mxu0 0
      %779 = vmatpush1.bf16.msra.mxu0 0
      %780 = vmatprep.subr.bf16.mxu0 %v761
      %781 = vmatpush1.bf16.msra.mxu0 %v758
      %782 = vmatprep.subr.bf16.mxu0 0
      %783 = vmatpush2.bf16.msra.mxu0 0
      %784 = vmatprep.subr.bf16.mxu0 0
      %785 = vmatpush2.bf16.msra.mxu0 0
      %786 = vmatprep.subr.bf16.mxu0 0
      %787 = vmatpush2.bf16.msra.mxu0 0
      %788 = vmatprep.subr.bf16.mxu0 0
      %789 = vmatpush2.bf16.msra.mxu0 0
      %790 = vmatprep.subr.bf16.mxu0 0
      %791 = vmatpush2.bf16.msra.mxu0 0
      %792 = vmatprep.subr.bf16.mxu0 0
      %793 = vmatpush2.bf16.msra.mxu0 0
      %794 = vmatprep.subr.bf16.mxu0 0
      %795 = vmatpush2.bf16.msra.mxu0 0
      %796 = vmatprep.subr.bf16.mxu0 0
      %797 = vmatpush2.bf16.msra.mxu0 0
      %798 = vmatprep.mubr.bf16.mxu0 0
      %799 = vmatmul.mubr.bf16.gmra.mxu0 %v755
      %v800 = vpop.f32.mrf.mxu0
      %v801 = vadd.f32 0.0, %v800
      %v802 = vpop.f32.mrf.mxu0
      %v803 = vadd.f32 0.0, %v802
      %v804 = vpop.f32.mrf.mxu0
      %v805 = vpop.f32.mrf.mxu0
      %806 = vdwg.mxu0
      %807 = vmatprep.subr.bf16.mxu0 0
      %808 = vmatpush1.bf16.msra.mxu0 0
      %809 = vmatprep.subr.bf16.mxu0 0
      %810 = vmatpush1.bf16.msra.mxu0 0
      %811 = vmatprep.subr.bf16.mxu0 0
      %812 = vmatpush1.bf16.msra.mxu0 0
      %813 = vmatprep.subr.bf16.mxu0 0
      %814 = vmatpush1.bf16.msra.mxu0 0
      %815 = vmatprep.subr.bf16.mxu0 0
      %816 = vmatpush1.bf16.msra.mxu0 0
      %817 = vmatprep.subr.bf16.mxu0 0
      %818 = vmatpush1.bf16.msra.mxu0 0
      %819 = vmatprep.subr.bf16.mxu0 0
      %820 = vmatpush1.bf16.msra.mxu0 0
      %821 = vmatprep.subr.bf16.mxu0 0
      %822 = vmatpush1.bf16.msra.mxu0 %v764
      %823 = vmatprep.subr.bf16.mxu0 0
      %824 = vmatpush2.bf16.msra.mxu0 0
      %825 = vmatprep.subr.bf16.mxu0 0
      %826 = vmatpush2.bf16.msra.mxu0 0
      %827 = vmatprep.subr.bf16.mxu0 0
      %828 = vmatpush2.bf16.msra.mxu0 0
      %829 = vmatprep.subr.bf16.mxu0 0
      %830 = vmatpush2.bf16.msra.mxu0 0
      %831 = vmatprep.subr.bf16.mxu0 0
      %832 = vmatpush2.bf16.msra.mxu0 0
      %833 = vmatprep.subr.bf16.mxu0 0
      %834 = vmatpush2.bf16.msra.mxu0 0
      %835 = vmatprep.subr.bf16.mxu0 0
      %836 = vmatpush2.bf16.msra.mxu0 0
      %837 = vmatprep.subr.bf16.mxu0 0
      %838 = vmatpush2.bf16.msra.mxu0 0
      %839 = vmatprep.mubr.bf16.mxu0 0
      %840 = vmatmul.mubr.bf16.gmra.mxu0 %v755
      %v841 = vpop.f32.mrf.mxu0
      %v842 = vadd.f32 0.0, %v841
      %v843 = vpop.f32.mrf.mxu0
      %v844 = vpop.f32.mrf.mxu0
      %v845 = vpop.f32.mrf.mxu0
      %846 = vdwg.mxu0
      %v847 = vadd.f32 %v737, %v801
      %v848 = vadd.f32 %v738, %v803
      %v849 = vadd.f32 %v739, %v842
      %s850 = scalar_lea.vmem %s1, 20
      %v851 = vld [vmem:[%s850] sm:$0xf]
      %852 = vrot.lane.b32.xlu0 %v307, 108
      %v853 = vpop.permute.xlu0 %852
      %854 = vrot.lane.b32.xlu0 %v308, 108
      %v855 = vpop.permute.xlu0 %854
      %856 = vrot.lane.b32.xlu0 %v309, 108
      %v857 = vpop.permute.xlu0 %856
      %858 = vrot.lane.b32.xlu0 %v411, 108
      %v859 = vpop.permute.xlu0 %858
      %vm860 = vcmask 883712
      %v861 = vsel %vm860, %v853, %v855
      %v862 = vsel %vm860, %v855, %v857
      %v863 = vsel %vm860, %v857, %v859
      %v865 = vsel %vm310, %v851, 0
      %v868 = vsel %vm314, %v861, 0
      %v871 = vsel %vm314, %v862, 0
      %v874 = vsel %vm314, %v863, 0
      %876 = vmatprep.subr.bf16.mxu0 0
      %877 = vmatpush1.bf16.msra.mxu0 0
      %878 = vmatprep.subr.bf16.mxu0 0
      %879 = vmatpush1.bf16.msra.mxu0 0
      %880 = vmatprep.subr.bf16.mxu0 0
      %881 = vmatpush1.bf16.msra.mxu0 0
      %882 = vmatprep.subr.bf16.mxu0 0
      %883 = vmatpush1.bf16.msra.mxu0 0
      %884 = vmatprep.subr.bf16.mxu0 0
      %885 = vmatpush1.bf16.msra.mxu0 0
      %886 = vmatprep.subr.bf16.mxu0 0
      %887 = vmatpush1.bf16.msra.mxu0 0
      %888 = vmatprep.subr.bf16.mxu0 0
      %889 = vmatpush1.bf16.msra.mxu0 0
      %890 = vmatprep.subr.bf16.mxu0 %v871
      %891 = vmatpush1.bf16.msra.mxu0 %v868
      %892 = vmatprep.subr.bf16.mxu0 0
      %893 = vmatpush2.bf16.msra.mxu0 0
      %894 = vmatprep.subr.bf16.mxu0 0
      %895 = vmatpush2.bf16.msra.mxu0 0
      %896 = vmatprep.subr.bf16.mxu0 0
      %897 = vmatpush2.bf16.msra.mxu0 0
      %898 = vmatprep.subr.bf16.mxu0 0
      %899 = vmatpush2.bf16.msra.mxu0 0
      %900 = vmatprep.subr.bf16.mxu0 0
      %901 = vmatpush2.bf16.msra.mxu0 0
      %902 = vmatprep.subr.bf16.mxu0 0
      %903 = vmatpush2.bf16.msra.mxu0 0
      %904 = vmatprep.subr.bf16.mxu0 0
      %905 = vmatpush2.bf16.msra.mxu0 0
      %906 = vmatprep.subr.bf16.mxu0 0
      %907 = vmatpush2.bf16.msra.mxu0 0
      %908 = vmatprep.mubr.bf16.mxu0 0
      %909 = vmatmul.mubr.bf16.gmra.mxu0 %v865
      %v910 = vpop.f32.mrf.mxu0
      %v911 = vadd.f32 0.0, %v910
      %v912 = vpop.f32.mrf.mxu0
      %v913 = vadd.f32 0.0, %v912
      %v914 = vpop.f32.mrf.mxu0
      %v915 = vpop.f32.mrf.mxu0
      %916 = vdwg.mxu0
      %917 = vmatprep.subr.bf16.mxu0 0
      %918 = vmatpush1.bf16.msra.mxu0 0
      %919 = vmatprep.subr.bf16.mxu0 0
      %920 = vmatpush1.bf16.msra.mxu0 0
      %921 = vmatprep.subr.bf16.mxu0 0
      %922 = vmatpush1.bf16.msra.mxu0 0
      %923 = vmatprep.subr.bf16.mxu0 0
      %924 = vmatpush1.bf16.msra.mxu0 0
      %925 = vmatprep.subr.bf16.mxu0 0
      %926 = vmatpush1.bf16.msra.mxu0 0
      %927 = vmatprep.subr.bf16.mxu0 0
      %928 = vmatpush1.bf16.msra.mxu0 0
      %929 = vmatprep.subr.bf16.mxu0 0
      %930 = vmatpush1.bf16.msra.mxu0 0
      %931 = vmatprep.subr.bf16.mxu0 0
      %932 = vmatpush1.bf16.msra.mxu0 %v874
      %933 = vmatprep.subr.bf16.mxu0 0
      %934 = vmatpush2.bf16.msra.mxu0 0
      %935 = vmatprep.subr.bf16.mxu0 0
      %936 = vmatpush2.bf16.msra.mxu0 0
      %937 = vmatprep.subr.bf16.mxu0 0
      %938 = vmatpush2.bf16.msra.mxu0 0
      %939 = vmatprep.subr.bf16.mxu0 0
      %940 = vmatpush2.bf16.msra.mxu0 0
      %941 = vmatprep.subr.bf16.mxu0 0
      %942 = vmatpush2.bf16.msra.mxu0 0
      %943 = vmatprep.subr.bf16.mxu0 0
      %944 = vmatpush2.bf16.msra.mxu0 0
      %945 = vmatprep.subr.bf16.mxu0 0
      %946 = vmatpush2.bf16.msra.mxu0 0
      %947 = vmatprep.subr.bf16.mxu0 0
      %948 = vmatpush2.bf16.msra.mxu0 0
      %949 = vmatprep.mubr.bf16.mxu0 0
      %950 = vmatmul.mubr.bf16.gmra.mxu0 %v865
      %v951 = vpop.f32.mrf.mxu0
      %v952 = vadd.f32 0.0, %v951
      %v953 = vpop.f32.mrf.mxu0
      %v954 = vpop.f32.mrf.mxu0
      %v955 = vpop.f32.mrf.mxu0
      %956 = vdwg.mxu0
      %v957 = vadd.f32 %v847, %v911
      %v958 = vadd.f32 %v848, %v913
      %v959 = vadd.f32 %v849, %v952
      %s960 = scalar_lea.vmem %s1, 24
      %v961 = vld [vmem:[%s960] sm:$0xf]
      %962 = vrot.lane.b32.xlu0 %v307, 92
      %v963 = vpop.permute.xlu0 %962
      %964 = vrot.lane.b32.xlu0 %v308, 92
      %v965 = vpop.permute.xlu0 %964
      %966 = vrot.lane.b32.xlu0 %v309, 92
      %v967 = vpop.permute.xlu0 %966
      %968 = vrot.lane.b32.xlu0 %v411, 92
      %v969 = vpop.permute.xlu0 %968
      %vm970 = vcmask 752640
      %v971 = vsel %vm970, %v963, %v965
      %v972 = vsel %vm970, %v965, %v967
      %v973 = vsel %vm970, %v967, %v969
      %v975 = vsel %vm310, %v961, 0
      %v978 = vsel %vm314, %v971, 0
      %v981 = vsel %vm314, %v972, 0
      %v984 = vsel %vm314, %v973, 0
      %986 = vmatprep.subr.bf16.mxu0 0
      %987 = vmatpush1.bf16.msra.mxu0 0
      %988 = vmatprep.subr.bf16.mxu0 0
      %989 = vmatpush1.bf16.msra.mxu0 0
      %990 = vmatprep.subr.bf16.mxu0 0
      %991 = vmatpush1.bf16.msra.mxu0 0
      %992 = vmatprep.subr.bf16.mxu0 0
      %993 = vmatpush1.bf16.msra.mxu0 0
      %994 = vmatprep.subr.bf16.mxu0 0
      %995 = vmatpush1.bf16.msra.mxu0 0
      %996 = vmatprep.subr.bf16.mxu0 0
      %997 = vmatpush1.bf16.msra.mxu0 0
      %998 = vmatprep.subr.bf16.mxu0 0
      %999 = vmatpush1.bf16.msra.mxu0 0
      %1000 = vmatprep.subr.bf16.mxu0 %v981
      %1001 = vmatpush1.bf16.msra.mxu0 %v978
      %1002 = vmatprep.subr.bf16.mxu0 0
      %1003 = vmatpush2.bf16.msra.mxu0 0
      %1004 = vmatprep.subr.bf16.mxu0 0
      %1005 = vmatpush2.bf16.msra.mxu0 0
      %1006 = vmatprep.subr.bf16.mxu0 0
      %1007 = vmatpush2.bf16.msra.mxu0 0
      %1008 = vmatprep.subr.bf16.mxu0 0
      %1009 = vmatpush2.bf16.msra.mxu0 0
      %1010 = vmatprep.subr.bf16.mxu0 0
      %1011 = vmatpush2.bf16.msra.mxu0 0
      %1012 = vmatprep.subr.bf16.mxu0 0
      %1013 = vmatpush2.bf16.msra.mxu0 0
      %1014 = vmatprep.subr.bf16.mxu0 0
      %1015 = vmatpush2.bf16.msra.mxu0 0
      %1016 = vmatprep.subr.bf16.mxu0 0
      %1017 = vmatpush2.bf16.msra.mxu0 0
      %1018 = vmatprep.mubr.bf16.mxu0 0
      %1019 = vmatmul.mubr.bf16.gmra.mxu0 %v975
      %v1020 = vpop.f32.mrf.mxu0
      %v1021 = vadd.f32 0.0, %v1020
      %v1022 = vpop.f32.mrf.mxu0
      %v1023 = vadd.f32 0.0, %v1022
      %v1024 = vpop.f32.mrf.mxu0
      %v1025 = vpop.f32.mrf.mxu0
      %1026 = vdwg.mxu0
      %1027 = vmatprep.subr.bf16.mxu0 0
      %1028 = vmatpush1.bf16.msra.mxu0 0
      %1029 = vmatprep.subr.bf16.mxu0 0
      %1030 = vmatpush1.bf16.msra.mxu0 0
      %1031 = vmatprep.subr.bf16.mxu0 0
      %1032 = vmatpush1.bf16.msra.mxu0 0
      %1033 = vmatprep.subr.bf16.mxu0 0
      %1034 = vmatpush1.bf16.msra.mxu0 0
      %1035 = vmatprep.subr.bf16.mxu0 0
      %1036 = vmatpush1.bf16.msra.mxu0 0
      %1037 = vmatprep.subr.bf16.mxu0 0
      %1038 = vmatpush1.bf16.msra.mxu0 0
      %1039 = vmatprep.subr.bf16.mxu0 0
      %1040 = vmatpush1.bf16.msra.mxu0 0
      %1041 = vmatprep.subr.bf16.mxu0 0
      %1042 = vmatpush1.bf16.msra.mxu0 %v984
      %1043 = vmatprep.subr.bf16.mxu0 0
      %1044 = vmatpush2.bf16.msra.mxu0 0
      %1045 = vmatprep.subr.bf16.mxu0 0
      %1046 = vmatpush2.bf16.msra.mxu0 0
      %1047 = vmatprep.subr.bf16.mxu0 0
      %1048 = vmatpush2.bf16.msra.mxu0 0
      %1049 = vmatprep.subr.bf16.mxu0 0
      %1050 = vmatpush2.bf16.msra.mxu0 0
      %1051 = vmatprep.subr.bf16.mxu0 0
      %1052 = vmatpush2.bf16.msra.mxu0 0
      %1053 = vmatprep.subr.bf16.mxu0 0
      %1054 = vmatpush2.bf16.msra.mxu0 0
      %1055 = vmatprep.subr.bf16.mxu0 0
      %1056 = vmatpush2.bf16.msra.mxu0 0
      %1057 = vmatprep.subr.bf16.mxu0 0
      %1058 = vmatpush2.bf16.msra.mxu0 0
      %1059 = vmatprep.mubr.bf16.mxu0 0
      %1060 = vmatmul.mubr.bf16.gmra.mxu0 %v975
      %v1061 = vpop.f32.mrf.mxu0
      %v1062 = vadd.f32 0.0, %v1061
      %v1063 = vpop.f32.mrf.mxu0
      %v1064 = vpop.f32.mrf.mxu0
      %v1065 = vpop.f32.mrf.mxu0
      %1066 = vdwg.mxu0
      %v1067 = vadd.f32 %v957, %v1021
      %v1068 = vadd.f32 %v958, %v1023
      %v1069 = vadd.f32 %v959, %v1062
      %s1070 = scalar_lea.vmem %s1, 28
      %v1071 = vld [vmem:[%s1070] sm:$0xf]
      %1072 = vrot.lane.b32.xlu0 %v307, 91
      %v1073 = vpop.permute.xlu0 %1072
      %1074 = vrot.lane.b32.xlu0 %v308, 91
      %v1075 = vpop.permute.xlu0 %1074
      %1076 = vrot.lane.b32.xlu0 %v309, 91
      %v1077 = vpop.permute.xlu0 %1076
      %1078 = vrot.lane.b32.xlu0 %v411, 91
      %v1079 = vpop.permute.xlu0 %1078
      %vm1080 = vcmask 744448
      %v1081 = vsel %vm1080, %v1073, %v1075
      %v1082 = vsel %vm1080, %v1075, %v1077
      %v1083 = vsel %vm1080, %v1077, %v1079
      %v1085 = vsel %vm310, %v1071, 0
      %v1088 = vsel %vm314, %v1081, 0
      %v1091 = vsel %vm314, %v1082, 0
      %v1094 = vsel %vm314, %v1083, 0
      %1096 = vmatprep.subr.bf16.mxu0 0
      %1097 = vmatpush1.bf16.msra.mxu0 0
      %1098 = vmatprep.subr.bf16.mxu0 0
      %1099 = vmatpush1.bf16.msra.mxu0 0
      %1100 = vmatprep.subr.bf16.mxu0 0
      %1101 = vmatpush1.bf16.msra.mxu0 0
      %1102 = vmatprep.subr.bf16.mxu0 0
      %1103 = vmatpush1.bf16.msra.mxu0 0
      %1104 = vmatprep.subr.bf16.mxu0 0
      %1105 = vmatpush1.bf16.msra.mxu0 0
      %1106 = vmatprep.subr.bf16.mxu0 0
      %1107 = vmatpush1.bf16.msra.mxu0 0
      %1108 = vmatprep.subr.bf16.mxu0 0
      %1109 = vmatpush1.bf16.msra.mxu0 0
      %1110 = vmatprep.subr.bf16.mxu0 %v1091
      %1111 = vmatpush1.bf16.msra.mxu0 %v1088
      %1112 = vmatprep.subr.bf16.mxu0 0
      %1113 = vmatpush2.bf16.msra.mxu0 0
      %1114 = vmatprep.subr.bf16.mxu0 0
      %1115 = vmatpush2.bf16.msra.mxu0 0
      %1116 = vmatprep.subr.bf16.mxu0 0
      %1117 = vmatpush2.bf16.msra.mxu0 0
      %1118 = vmatprep.subr.bf16.mxu0 0
      %1119 = vmatpush2.bf16.msra.mxu0 0
      %1120 = vmatprep.subr.bf16.mxu0 0
      %1121 = vmatpush2.bf16.msra.mxu0 0
      %1122 = vmatprep.subr.bf16.mxu0 0
      %1123 = vmatpush2.bf16.msra.mxu0 0
      %1124 = vmatprep.subr.bf16.mxu0 0
      %1125 = vmatpush2.bf16.msra.mxu0 0
      %1126 = vmatprep.subr.bf16.mxu0 0
      %1127 = vmatpush2.bf16.msra.mxu0 0
      %1128 = vmatprep.mubr.bf16.mxu0 0
      %1129 = vmatmul.mubr.bf16.gmra.mxu0 %v1085
      %v1130 = vpop.f32.mrf.mxu0
      %v1131 = vadd.f32 0.0, %v1130
      %v1132 = vpop.f32.mrf.mxu0
      %v1133 = vadd.f32 0.0, %v1132
      %v1134 = vpop.f32.mrf.mxu0
      %v1135 = vpop.f32.mrf.mxu0
      %1136 = vdwg.mxu0
      %1137 = vmatprep.subr.bf16.mxu0 0
      %1138 = vmatpush1.bf16.msra.mxu0 0
      %1139 = vmatprep.subr.bf16.mxu0 0
      %1140 = vmatpush1.bf16.msra.mxu0 0
      %1141 = vmatprep.subr.bf16.mxu0 0
      %1142 = vmatpush1.bf16.msra.mxu0 0
      %1143 = vmatprep.subr.bf16.mxu0 0
      %1144 = vmatpush1.bf16.msra.mxu0 0
      %1145 = vmatprep.subr.bf16.mxu0 0
      %1146 = vmatpush1.bf16.msra.mxu0 0
      %1147 = vmatprep.subr.bf16.mxu0 0
      %1148 = vmatpush1.bf16.msra.mxu0 0
      %1149 = vmatprep.subr.bf16.mxu0 0
      %1150 = vmatpush1.bf16.msra.mxu0 0
      %1151 = vmatprep.subr.bf16.mxu0 0
      %1152 = vmatpush1.bf16.msra.mxu0 %v1094
      %1153 = vmatprep.subr.bf16.mxu0 0
      %1154 = vmatpush2.bf16.msra.mxu0 0
      %1155 = vmatprep.subr.bf16.mxu0 0
      %1156 = vmatpush2.bf16.msra.mxu0 0
      %1157 = vmatprep.subr.bf16.mxu0 0
      %1158 = vmatpush2.bf16.msra.mxu0 0
      %1159 = vmatprep.subr.bf16.mxu0 0
      %1160 = vmatpush2.bf16.msra.mxu0 0
      %1161 = vmatprep.subr.bf16.mxu0 0
      %1162 = vmatpush2.bf16.msra.mxu0 0
      %1163 = vmatprep.subr.bf16.mxu0 0
      %1164 = vmatpush2.bf16.msra.mxu0 0
      %1165 = vmatprep.subr.bf16.mxu0 0
      %1166 = vmatpush2.bf16.msra.mxu0 0
      %1167 = vmatprep.subr.bf16.mxu0 0
      %1168 = vmatpush2.bf16.msra.mxu0 0
      %1169 = vmatprep.mubr.bf16.mxu0 0
      %1170 = vmatmul.mubr.bf16.gmra.mxu0 %v1085
      %v1171 = vpop.f32.mrf.mxu0
      %v1172 = vadd.f32 0.0, %v1171
      %v1173 = vpop.f32.mrf.mxu0
      %v1174 = vpop.f32.mrf.mxu0
      %v1175 = vpop.f32.mrf.mxu0
      %1176 = vdwg.mxu0
      %v1177 = vadd.f32 %v1067, %v1131
      %v1178 = vadd.f32 %v1068, %v1133
      %v1179 = vadd.f32 %v1069, %v1172
      %s1180 = scalar_lea.vmem %s1, 32
      %v1181 = vld [vmem:[%s1180] sm:$0xf]
      %1182 = vrot.lane.b32.xlu0 %v307, 90
      %v1183 = vpop.permute.xlu0 %1182
      %1184 = vrot.lane.b32.xlu0 %v308, 90
      %v1185 = vpop.permute.xlu0 %1184
      %1186 = vrot.lane.b32.xlu0 %v309, 90
      %v1187 = vpop.permute.xlu0 %1186
      %1188 = vrot.lane.b32.xlu0 %v411, 90
      %v1189 = vpop.permute.xlu0 %1188
      %vm1190 = vcmask 736256
      %v1191 = vsel %vm1190, %v1183, %v1185
      %v1192 = vsel %vm1190, %v1185, %v1187
      %v1193 = vsel %vm1190, %v1187, %v1189
      %v1195 = vsel %vm310, %v1181, 0
      %v1198 = vsel %vm314, %v1191, 0
      %v1201 = vsel %vm314, %v1192, 0
      %v1204 = vsel %vm314, %v1193, 0
      %1206 = vmatprep.subr.bf16.mxu0 0
      %1207 = vmatpush1.bf16.msra.mxu0 0
      %1208 = vmatprep.subr.bf16.mxu0 0
      %1209 = vmatpush1.bf16.msra.mxu0 0
      %1210 = vmatprep.subr.bf16.mxu0 0
      %1211 = vmatpush1.bf16.msra.mxu0 0
      %1212 = vmatprep.subr.bf16.mxu0 0
      %1213 = vmatpush1.bf16.msra.mxu0 0
      %1214 = vmatprep.subr.bf16.mxu0 0
      %1215 = vmatpush1.bf16.msra.mxu0 0
      %1216 = vmatprep.subr.bf16.mxu0 0
      %1217 = vmatpush1.bf16.msra.mxu0 0
      %1218 = vmatprep.subr.bf16.mxu0 0
      %1219 = vmatpush1.bf16.msra.mxu0 0
      %1220 = vmatprep.subr.bf16.mxu0 %v1201
      %1221 = vmatpush1.bf16.msra.mxu0 %v1198
      %1222 = vmatprep.subr.bf16.mxu0 0
      %1223 = vmatpush2.bf16.msra.mxu0 0
      %1224 = vmatprep.subr.bf16.mxu0 0
      %1225 = vmatpush2.bf16.msra.mxu0 0
      %1226 = vmatprep.subr.bf16.mxu0 0
      %1227 = vmatpush2.bf16.msra.mxu0 0
      %1228 = vmatprep.subr.bf16.mxu0 0
      %1229 = vmatpush2.bf16.msra.mxu0 0
      %1230 = vmatprep.subr.bf16.mxu0 0
      %1231 = vmatpush2.bf16.msra.mxu0 0
      %1232 = vmatprep.subr.bf16.mxu0 0
      %1233 = vmatpush2.bf16.msra.mxu0 0
      %1234 = vmatprep.subr.bf16.mxu0 0
      %1235 = vmatpush2.bf16.msra.mxu0 0
      %1236 = vmatprep.subr.bf16.mxu0 0
      %1237 = vmatpush2.bf16.msra.mxu0 0
      %1238 = vmatprep.mubr.bf16.mxu0 0
      %1239 = vmatmul.mubr.bf16.gmra.mxu0 %v1195
      %v1240 = vpop.f32.mrf.mxu0
      %v1241 = vadd.f32 0.0, %v1240
      %v1242 = vpop.f32.mrf.mxu0
      %v1243 = vadd.f32 0.0, %v1242
      %v1244 = vpop.f32.mrf.mxu0
      %v1245 = vpop.f32.mrf.mxu0
      %1246 = vdwg.mxu0
      %1247 = vmatprep.subr.bf16.mxu0 0
      %1248 = vmatpush1.bf16.msra.mxu0 0
      %1249 = vmatprep.subr.bf16.mxu0 0
      %1250 = vmatpush1.bf16.msra.mxu0 0
      %1251 = vmatprep.subr.bf16.mxu0 0
      %1252 = vmatpush1.bf16.msra.mxu0 0
      %1253 = vmatprep.subr.bf16.mxu0 0
      %1254 = vmatpush1.bf16.msra.mxu0 0
      %1255 = vmatprep.subr.bf16.mxu0 0
      %1256 = vmatpush1.bf16.msra.mxu0 0
      %1257 = vmatprep.subr.bf16.mxu0 0
      %1258 = vmatpush1.bf16.msra.mxu0 0
      %1259 = vmatprep.subr.bf16.mxu0 0
      %1260 = vmatpush1.bf16.msra.mxu0 0
      %1261 = vmatprep.subr.bf16.mxu0 0
      %1262 = vmatpush1.bf16.msra.mxu0 %v1204
      %1263 = vmatprep.subr.bf16.mxu0 0
      %1264 = vmatpush2.bf16.msra.mxu0 0
      %1265 = vmatprep.subr.bf16.mxu0 0
      %1266 = vmatpush2.bf16.msra.mxu0 0
      %1267 = vmatprep.subr.bf16.mxu0 0
      %1268 = vmatpush2.bf16.msra.mxu0 0
      %1269 = vmatprep.subr.bf16.mxu0 0
      %1270 = vmatpush2.bf16.msra.mxu0 0
      %1271 = vmatprep.subr.bf16.mxu0 0
      %1272 = vmatpush2.bf16.msra.mxu0 0
      %1273 = vmatprep.subr.bf16.mxu0 0
      %1274 = vmatpush2.bf16.msra.mxu0 0
      %1275 = vmatprep.subr.bf16.mxu0 0
      %1276 = vmatpush2.bf16.msra.mxu0 0
      %1277 = vmatprep.subr.bf16.mxu0 0
      %1278 = vmatpush2.bf16.msra.mxu0 0
      %1279 = vmatprep.mubr.bf16.mxu0 0
      %1280 = vmatmul.mubr.bf16.gmra.mxu0 %v1195
      %v1281 = vpop.f32.mrf.mxu0
      %v1282 = vadd.f32 0.0, %v1281
      %v1283 = vpop.f32.mrf.mxu0
      %v1284 = vpop.f32.mrf.mxu0
      %v1285 = vpop.f32.mrf.mxu0
      %1286 = vdwg.mxu0
      %v1287 = vadd.f32 %v1177, %v1241
      %v1288 = vadd.f32 %v1178, %v1243
      %v1289 = vadd.f32 %v1179, %v1282
      %v1290 = vmax.f32 %v1287, 0.0
      %v1291 = vmax.f32 %v1288, 0.0
      %v1292 = vmax.f32 %v1289, 0.0
      %1293 = vst [vmem:[%s286] sm:$0xff] %v1290
      %1294 = vst [vmem:[%s286 + $0x8] sm:$0xff] %v1291
      %1295 = vst [vmem:[%s286 + $0x10] sm:$0xff] %v1292
      %1296 = vst [vmem:[#allocation2] sm:$0xf] 0
      %1297 = vst [vmem:[#allocation2 + $0x10] sm:$0xf] 0
      %v1298 = vld [vmem:[%s5] sm:$0x7]
      %v1300 = vlaneseq
      %v1301 = vshrl.u32 %v1300, 7
      %v1302 = vsub.s32 0, %v1301
      %v1303 = vrot.slane %v1298, %v1302
      %v1304 = vlaneseq
      %v1305 = vshrl.u32 %v1304, 7
      %v1306 = vsub.s32 1, %v1305
      %v1307 = vrot.slane %v1298, %v1306
      %v1308 = vlaneseq
      %v1309 = vshrl.u32 %v1308, 7
      %v1310 = vsub.s32 2, %v1309
      %v1311 = vrot.slane %v1298, %v1310
      %v1315 = vmul.f32 %v1290, %v1303
      %v1316 = vmul.f32 %v1291, %v1307
      %v1317 = vmul.f32 %v1292, %v1311
      %v1318 = vpack.c.bf16 %v1315, %v1315
      %v1319 = vpack.c.bf16 %v1316, %v1316
      %v1320 = vpack.c.bf16 %v1317, %v1317
      %v1324 = vunpack.c.l.b16 %v1318
      %v1325 = vunpack.c.l.b16 %v1319
      %v1326 = vunpack.c.l.b16 %v1320
      %v1327 = vpack.c.b16 %v1325, %v1324
      %v1328 = vpack.c.b16 %v1326, %v1326
      %1331 = vst [vmem:[#allocation2 + $0x4] sm:$0xff] %v1327
      %1332 = vst [vmem:[#allocation2 + $0xc] sm:$0xf] %v1328
      %v1333 = vld [vmem:[#allocation2] sm:$0xff]
      %v1334 = vld [vmem:[#allocation2 + $0x8] sm:$0xff]
      %v1335 = vld [vmem:[#allocation2 + $0x10] sm:$0xf]
      %v1336 = vld [vmem:[%s4] sm:$0xff]
      %v1337 = vld [vmem:[%s4 + $0x8] sm:$0xff]
      %1339 = vset.pattern.permute.xlu0 0
      %1340 = vperm.xlu0 %1339, %v1336
      %v1341 = vpop.permute.xlu0 %1340
      %1344 = vset.pattern.permute.xlu0 0
      %1345 = vperm.xlu0 %1344, %v1337
      %v1346 = vpop.permute.xlu0 %1345
      %v1348 = vld [vmem:[%s3] sm:$0xf]
      %v1349 = vld [vmem:[%s3 + $0x4] sm:$0xf]
      %v1352 = vunpack.c.l.b16 %v1348
      %v1353 = vunpack.c.l.b16 %v1349
      %v1354 = vpack.c.b16 %v1353, %v1352
      %v1357 = vunpack.c.l.b16 %v1333
      %v1358 = vunpack.c.h.b16 %v1333
      %v1359 = vunpack.c.l.b16 %v1334
      %v1360 = vunpack.c.h.b16 %v1334
      %v1361 = vpack.c.b16 %v1357, %v1357
      %v1362 = vpack.c.b16 %v1358, %v1358
      %v1363 = vpack.c.b16 %v1359, %v1359
      %v1364 = vpack.c.b16 %v1360, %v1360
      %1365 = vrot.lane.b32.xlu0 %v1361, 19
      %v1366 = vpop.permute.xlu0 %1365
      %1367 = vrot.lane.b32.xlu0 %v1362, 19
      %v1368 = vpop.permute.xlu0 %1367
      %1369 = vrot.lane.b32.xlu0 %v1363, 19
      %v1370 = vpop.permute.xlu0 %1369
      %1371 = vrot.lane.b32.xlu0 %v1364, 19
      %v1372 = vpop.permute.xlu0 %1371
      %vm1373 = vcmask 154624
      %v1374 = vsel %vm1373, %v1366, %v1368
      %v1375 = vsel %vm1373, %v1368, %v1370
      %v1376 = vsel %vm1373, %v1370, %v1372
      %v1378 = vsel %vm310, %v1354, 0
      %v1381 = vsel %vm314, %v1374, 0
      %v1384 = vsel %vm314, %v1375, 0
      %v1387 = vsel %vm314, %v1376, 0
      %1389 = vmatprep.subr.bf16.mxu0 0
      %1390 = vmatpush1.bf16.msra.mxu0 0
      %1391 = vmatprep.subr.bf16.mxu0 0
      %1392 = vmatpush1.bf16.msra.mxu0 0
      %1393 = vmatprep.subr.bf16.mxu0 0
      %1394 = vmatpush1.bf16.msra.mxu0 0
      %1395 = vmatprep.subr.bf16.mxu0 0
      %1396 = vmatpush1.bf16.msra.mxu0 0
      %1397 = vmatprep.subr.bf16.mxu0 0
      %1398 = vmatpush1.bf16.msra.mxu0 0
      %1399 = vmatprep.subr.bf16.mxu0 0
      %1400 = vmatpush1.bf16.msra.mxu0 0
      %1401 = vmatprep.subr.bf16.mxu0 0
      %1402 = vmatpush1.bf16.msra.mxu0 0
      %1403 = vmatprep.subr.bf16.mxu0 %v1384
      %1404 = vmatpush1.bf16.msra.mxu0 %v1381
      %1405 = vmatprep.subr.bf16.mxu0 0
      %1406 = vmatpush2.bf16.msra.mxu0 0
      %1407 = vmatprep.subr.bf16.mxu0 0
      %1408 = vmatpush2.bf16.msra.mxu0 0
      %1409 = vmatprep.subr.bf16.mxu0 0
      %1410 = vmatpush2.bf16.msra.mxu0 0
      %1411 = vmatprep.subr.bf16.mxu0 0
      %1412 = vmatpush2.bf16.msra.mxu0 0
      %1413 = vmatprep.subr.bf16.mxu0 0
      %1414 = vmatpush2.bf16.msra.mxu0 0
      %1415 = vmatprep.subr.bf16.mxu0 0
      %1416 = vmatpush2.bf16.msra.mxu0 0
      %1417 = vmatprep.subr.bf16.mxu0 0
      %1418 = vmatpush2.bf16.msra.mxu0 0
      %1419 = vmatprep.subr.bf16.mxu0 0
      %1420 = vmatpush2.bf16.msra.mxu0 0
      %1421 = vmatprep.mubr.bf16.mxu0 0
      %1422 = vmatmul.mubr.bf16.gmra.mxu0 %v1378
      %v1423 = vpop.f32.mrf.mxu0
      %v1424 = vadd.f32 0.0, %v1423
      %v1425 = vpop.f32.mrf.mxu0
      %v1426 = vadd.f32 0.0, %v1425
      %v1427 = vpop.f32.mrf.mxu0
      %v1428 = vadd.f32 0.0, %v1427
      %v1429 = vpop.f32.mrf.mxu0
      %v1430 = vadd.f32 0.0, %v1429
      %1431 = vdwg.mxu0
      %1432 = vmatprep.subr.bf16.mxu0 0
      %1433 = vmatpush1.bf16.msra.mxu0 0
      %1434 = vmatprep.subr.bf16.mxu0 0
      %1435 = vmatpush1.bf16.msra.mxu0 0
      %1436 = vmatprep.subr.bf16.mxu0 0
      %1437 = vmatpush1.bf16.msra.mxu0 0
      %1438 = vmatprep.subr.bf16.mxu0 0
      %1439 = vmatpush1.bf16.msra.mxu0 0
      %1440 = vmatprep.subr.bf16.mxu0 0
      %1441 = vmatpush1.bf16.msra.mxu0 0
      %1442 = vmatprep.subr.bf16.mxu0 0
      %1443 = vmatpush1.bf16.msra.mxu0 0
      %1444 = vmatprep.subr.bf16.mxu0 0
      %1445 = vmatpush1.bf16.msra.mxu0 0
      %1446 = vmatprep.subr.bf16.mxu0 0
      %1447 = vmatpush1.bf16.msra.mxu0 %v1387
      %1448 = vmatprep.subr.bf16.mxu0 0
      %1449 = vmatpush2.bf16.msra.mxu0 0
      %1450 = vmatprep.subr.bf16.mxu0 0
      %1451 = vmatpush2.bf16.msra.mxu0 0
      %1452 = vmatprep.subr.bf16.mxu0 0
      %1453 = vmatpush2.bf16.msra.mxu0 0
      %1454 = vmatprep.subr.bf16.mxu0 0
      %1455 = vmatpush2.bf16.msra.mxu0 0
      %1456 = vmatprep.subr.bf16.mxu0 0
      %1457 = vmatpush2.bf16.msra.mxu0 0
      %1458 = vmatprep.subr.bf16.mxu0 0
      %1459 = vmatpush2.bf16.msra.mxu0 0
      %1460 = vmatprep.subr.bf16.mxu0 0
      %1461 = vmatpush2.bf16.msra.mxu0 0
      %1462 = vmatprep.subr.bf16.mxu0 0
      %1463 = vmatpush2.bf16.msra.mxu0 0
      %1464 = vmatprep.mubr.bf16.mxu0 0
      %1465 = vmatmul.mubr.bf16.gmra.mxu0 %v1378
      %v1466 = vpop.f32.mrf.mxu0
      %v1467 = vadd.f32 0.0, %v1466
      %v1468 = vpop.f32.mrf.mxu0
      %v1469 = vpop.f32.mrf.mxu0
      %v1470 = vadd.f32 0.0, %v1469
      %v1471 = vpop.f32.mrf.mxu0
      %1472 = vdwg.mxu0
      %v1473 = vadd.f32 %v1341, %v1424
      %v1474 = vadd.f32 %v1341, %v1426
      %v1475 = vadd.f32 %v1341, %v1467
      %v1476 = vadd.f32 %v1346, %v1428
      %v1477 = vadd.f32 %v1346, %v1430
      %v1478 = vadd.f32 %v1346, %v1470
      %s1479 = scalar_lea.vmem %s3, 8
      %v1480 = vld [vmem:[%s1479] sm:$0xf]
      %v1481 = vld [vmem:[%s1479 + $0x4] sm:$0xf]
      %v1484 = vunpack.c.l.b16 %v1480
      %v1485 = vunpack.c.l.b16 %v1481
      %v1486 = vpack.c.b16 %v1485, %v1484
      %1487 = vrot.lane.b32.xlu0 %v1361, 18
      %v1488 = vpop.permute.xlu0 %1487
      %1489 = vrot.lane.b32.xlu0 %v1362, 18
      %v1490 = vpop.permute.xlu0 %1489
      %1491 = vrot.lane.b32.xlu0 %v1363, 18
      %v1492 = vpop.permute.xlu0 %1491
      %1493 = vrot.lane.b32.xlu0 %v1364, 18
      %v1494 = vpop.permute.xlu0 %1493
      %vm1495 = vcmask 146432
      %v1496 = vsel %vm1495, %v1488, %v1490
      %v1497 = vsel %vm1495, %v1490, %v1492
      %v1498 = vsel %vm1495, %v1492, %v1494
      %v1500 = vsel %vm310, %v1486, 0
      %v1503 = vsel %vm314, %v1496, 0
      %v1506 = vsel %vm314, %v1497, 0
      %v1509 = vsel %vm314, %v1498, 0
      %1511 = vmatprep.subr.bf16.mxu0 0
      %1512 = vmatpush1.bf16.msra.mxu0 0
      %1513 = vmatprep.subr.bf16.mxu0 0
      %1514 = vmatpush1.bf16.msra.mxu0 0
      %1515 = vmatprep.subr.bf16.mxu0 0
      %1516 = vmatpush1.bf16.msra.mxu0 0
      %1517 = vmatprep.subr.bf16.mxu0 0
      %1518 = vmatpush1.bf16.msra.mxu0 0
      %1519 = vmatprep.subr.bf16.mxu0 0
      %1520 = vmatpush1.bf16.msra.mxu0 0
      %1521 = vmatprep.subr.bf16.mxu0 0
      %1522 = vmatpush1.bf16.msra.mxu0 0
      %1523 = vmatprep.subr.bf16.mxu0 0
      %1524 = vmatpush1.bf16.msra.mxu0 0
      %1525 = vmatprep.subr.bf16.mxu0 %v1506
      %1526 = vmatpush1.bf16.msra.mxu0 %v1503
      %1527 = vmatprep.subr.bf16.mxu0 0
      %1528 = vmatpush2.bf16.msra.mxu0 0
      %1529 = vmatprep.subr.bf16.mxu0 0
      %1530 = vmatpush2.bf16.msra.mxu0 0
      %1531 = vmatprep.subr.bf16.mxu0 0
      %1532 = vmatpush2.bf16.msra.mxu0 0
      %1533 = vmatprep.subr.bf16.mxu0 0
      %1534 = vmatpush2.bf16.msra.mxu0 0
      %1535 = vmatprep.subr.bf16.mxu0 0
      %1536 = vmatpush2.bf16.msra.mxu0 0
      %1537 = vmatprep.subr.bf16.mxu0 0
      %1538 = vmatpush2.bf16.msra.mxu0 0
      %1539 = vmatprep.subr.bf16.mxu0 0
      %1540 = vmatpush2.bf16.msra.mxu0 0
      %1541 = vmatprep.subr.bf16.mxu0 0
      %1542 = vmatpush2.bf16.msra.mxu0 0
      %1543 = vmatprep.mubr.bf16.mxu0 0
      %1544 = vmatmul.mubr.bf16.gmra.mxu0 %v1500
      %v1545 = vpop.f32.mrf.mxu0
      %v1546 = vadd.f32 0.0, %v1545
      %v1547 = vpop.f32.mrf.mxu0
      %v1548 = vadd.f32 0.0, %v1547
      %v1549 = vpop.f32.mrf.mxu0
      %v1550 = vadd.f32 0.0, %v1549
      %v1551 = vpop.f32.mrf.mxu0
      %v1552 = vadd.f32 0.0, %v1551
      %1553 = vdwg.mxu0
      %1554 = vmatprep.subr.bf16.mxu0 0
      %1555 = vmatpush1.bf16.msra.mxu0 0
      %1556 = vmatprep.subr.bf16.mxu0 0
      %1557 = vmatpush1.bf16.msra.mxu0 0
      %1558 = vmatprep.subr.bf16.mxu0 0
      %1559 = vmatpush1.bf16.msra.mxu0 0
      %1560 = vmatprep.subr.bf16.mxu0 0
      %1561 = vmatpush1.bf16.msra.mxu0 0
      %1562 = vmatprep.subr.bf16.mxu0 0
      %1563 = vmatpush1.bf16.msra.mxu0 0
      %1564 = vmatprep.subr.bf16.mxu0 0
      %1565 = vmatpush1.bf16.msra.mxu0 0
      %1566 = vmatprep.subr.bf16.mxu0 0
      %1567 = vmatpush1.bf16.msra.mxu0 0
      %1568 = vmatprep.subr.bf16.mxu0 0
      %1569 = vmatpush1.bf16.msra.mxu0 %v1509
      %1570 = vmatprep.subr.bf16.mxu0 0
      %1571 = vmatpush2.bf16.msra.mxu0 0
      %1572 = vmatprep.subr.bf16.mxu0 0
      %1573 = vmatpush2.bf16.msra.mxu0 0
      %1574 = vmatprep.subr.bf16.mxu0 0
      %1575 = vmatpush2.bf16.msra.mxu0 0
      %1576 = vmatprep.subr.bf16.mxu0 0
      %1577 = vmatpush2.bf16.msra.mxu0 0
      %1578 = vmatprep.subr.bf16.mxu0 0
      %1579 = vmatpush2.bf16.msra.mxu0 0
      %1580 = vmatprep.subr.bf16.mxu0 0
      %1581 = vmatpush2.bf16.msra.mxu0 0
      %1582 = vmatprep.subr.bf16.mxu0 0
      %1583 = vmatpush2.bf16.msra.mxu0 0
      %1584 = vmatprep.subr.bf16.mxu0 0
      %1585 = vmatpush2.bf16.msra.mxu0 0
      %1586 = vmatprep.mubr.bf16.mxu0 0
      %1587 = vmatmul.mubr.bf16.gmra.mxu0 %v1500
      %v1588 = vpop.f32.mrf.mxu0
      %v1589 = vadd.f32 0.0, %v1588
      %v1590 = vpop.f32.mrf.mxu0
      %v1591 = vpop.f32.mrf.mxu0
      %v1592 = vadd.f32 0.0, %v1591
      %v1593 = vpop.f32.mrf.mxu0
      %1594 = vdwg.mxu0
      %v1595 = vadd.f32 %v1473, %v1546
      %v1596 = vadd.f32 %v1474, %v1548
      %v1597 = vadd.f32 %v1475, %v1589
      %v1598 = vadd.f32 %v1476, %v1550
      %v1599 = vadd.f32 %v1477, %v1552
      %v1600 = vadd.f32 %v1478, %v1592
      %s1601 = scalar_lea.vmem %s3, 16
      %v1602 = vld [vmem:[%s1601] sm:$0xf]
      %v1603 = vld [vmem:[%s1601 + $0x4] sm:$0xf]
      %v1606 = vunpack.c.l.b16 %v1602
      %v1607 = vunpack.c.l.b16 %v1603
      %v1608 = vpack.c.b16 %v1607, %v1606
      %1609 = vrot.lane.b32.xlu0 %v1361, 17
      %v1610 = vpop.permute.xlu0 %1609
      %1611 = vrot.lane.b32.xlu0 %v1362, 17
      %v1612 = vpop.permute.xlu0 %1611
      %1613 = vrot.lane.b32.xlu0 %v1363, 17
      %v1614 = vpop.permute.xlu0 %1613
      %1615 = vrot.lane.b32.xlu0 %v1364, 17
      %v1616 = vpop.permute.xlu0 %1615
      %vm1617 = vcmask 138240
      %v1618 = vsel %vm1617, %v1610, %v1612
      %v1619 = vsel %vm1617, %v1612, %v1614
      %v1620 = vsel %vm1617, %v1614, %v1616
      %v1622 = vsel %vm310, %v1608, 0
      %v1625 = vsel %vm314, %v1618, 0
      %v1628 = vsel %vm314, %v1619, 0
      %v1631 = vsel %vm314, %v1620, 0
      %1633 = vmatprep.subr.bf16.mxu0 0
      %1634 = vmatpush1.bf16.msra.mxu0 0
      %1635 = vmatprep.subr.bf16.mxu0 0
      %1636 = vmatpush1.bf16.msra.mxu0 0
      %1637 = vmatprep.subr.bf16.mxu0 0
      %1638 = vmatpush1.bf16.msra.mxu0 0
      %1639 = vmatprep.subr.bf16.mxu0 0
      %1640 = vmatpush1.bf16.msra.mxu0 0
      %1641 = vmatprep.subr.bf16.mxu0 0
      %1642 = vmatpush1.bf16.msra.mxu0 0
      %1643 = vmatprep.subr.bf16.mxu0 0
      %1644 = vmatpush1.bf16.msra.mxu0 0
      %1645 = vmatprep.subr.bf16.mxu0 0
      %1646 = vmatpush1.bf16.msra.mxu0 0
      %1647 = vmatprep.subr.bf16.mxu0 %v1628
      %1648 = vmatpush1.bf16.msra.mxu0 %v1625
      %1649 = vmatprep.subr.bf16.mxu0 0
      %1650 = vmatpush2.bf16.msra.mxu0 0
      %1651 = vmatprep.subr.bf16.mxu0 0
      %1652 = vmatpush2.bf16.msra.mxu0 0
      %1653 = vmatprep.subr.bf16.mxu0 0
      %1654 = vmatpush2.bf16.msra.mxu0 0
      %1655 = vmatprep.subr.bf16.mxu0 0
      %1656 = vmatpush2.bf16.msra.mxu0 0
      %1657 = vmatprep.subr.bf16.mxu0 0
      %1658 = vmatpush2.bf16.msra.mxu0 0
      %1659 = vmatprep.subr.bf16.mxu0 0
      %1660 = vmatpush2.bf16.msra.mxu0 0
      %1661 = vmatprep.subr.bf16.mxu0 0
      %1662 = vmatpush2.bf16.msra.mxu0 0
      %1663 = vmatprep.subr.bf16.mxu0 0
      %1664 = vmatpush2.bf16.msra.mxu0 0
      %1665 = vmatprep.mubr.bf16.mxu0 0
      %1666 = vmatmul.mubr.bf16.gmra.mxu0 %v1622
      %v1667 = vpop.f32.mrf.mxu0
      %v1668 = vadd.f32 0.0, %v1667
      %v1669 = vpop.f32.mrf.mxu0
      %v1670 = vadd.f32 0.0, %v1669
      %v1671 = vpop.f32.mrf.mxu0
      %v1672 = vadd.f32 0.0, %v1671
      %v1673 = vpop.f32.mrf.mxu0
      %v1674 = vadd.f32 0.0, %v1673
      %1675 = vdwg.mxu0
      %1676 = vmatprep.subr.bf16.mxu0 0
      %1677 = vmatpush1.bf16.msra.mxu0 0
      %1678 = vmatprep.subr.bf16.mxu0 0
      %1679 = vmatpush1.bf16.msra.mxu0 0
      %1680 = vmatprep.subr.bf16.mxu0 0
      %1681 = vmatpush1.bf16.msra.mxu0 0
      %1682 = vmatprep.subr.bf16.mxu0 0
      %1683 = vmatpush1.bf16.msra.mxu0 0
      %1684 = vmatprep.subr.bf16.mxu0 0
      %1685 = vmatpush1.bf16.msra.mxu0 0
      %1686 = vmatprep.subr.bf16.mxu0 0
      %1687 = vmatpush1.bf16.msra.mxu0 0
      %1688 = vmatprep.subr.bf16.mxu0 0
      %1689 = vmatpush1.bf16.msra.mxu0 0
      %1690 = vmatprep.subr.bf16.mxu0 0
      %1691 = vmatpush1.bf16.msra.mxu0 %v1631
      %1692 = vmatprep.subr.bf16.mxu0 0
      %1693 = vmatpush2.bf16.msra.mxu0 0
      %1694 = vmatprep.subr.bf16.mxu0 0
      %1695 = vmatpush2.bf16.msra.mxu0 0
      %1696 = vmatprep.subr.bf16.mxu0 0
      %1697 = vmatpush2.bf16.msra.mxu0 0
      %1698 = vmatprep.subr.bf16.mxu0 0
      %1699 = vmatpush2.bf16.msra.mxu0 0
      %1700 = vmatprep.subr.bf16.mxu0 0
      %1701 = vmatpush2.bf16.msra.mxu0 0
      %1702 = vmatprep.subr.bf16.mxu0 0
      %1703 = vmatpush2.bf16.msra.mxu0 0
      %1704 = vmatprep.subr.bf16.mxu0 0
      %1705 = vmatpush2.bf16.msra.mxu0 0
      %1706 = vmatprep.subr.bf16.mxu0 0
      %1707 = vmatpush2.bf16.msra.mxu0 0
      %1708 = vmatprep.mubr.bf16.mxu0 0
      %1709 = vmatmul.mubr.bf16.gmra.mxu0 %v1622
      %v1710 = vpop.f32.mrf.mxu0
      %v1711 = vadd.f32 0.0, %v1710
      %v1712 = vpop.f32.mrf.mxu0
      %v1713 = vpop.f32.mrf.mxu0
      %v1714 = vadd.f32 0.0, %v1713
      %v1715 = vpop.f32.mrf.mxu0
      %1716 = vdwg.mxu0
      %v1717 = vadd.f32 %v1595, %v1668
      %v1718 = vadd.f32 %v1596, %v1670
      %v1719 = vadd.f32 %v1597, %v1711
      %v1720 = vadd.f32 %v1598, %v1672
      %v1721 = vadd.f32 %v1599, %v1674
      %v1722 = vadd.f32 %v1600, %v1714
      %s1723 = scalar_lea.vmem %s3, 24
      %v1724 = vld [vmem:[%s1723] sm:$0xf]
      %v1725 = vld [vmem:[%s1723 + $0x4] sm:$0xf]
      %v1728 = vunpack.c.l.b16 %v1724
      %v1729 = vunpack.c.l.b16 %v1725
      %v1730 = vpack.c.b16 %v1729, %v1728
      %1731 = vrot.lane.b32.xlu0 %v1361, 1
      %v1732 = vpop.permute.xlu0 %1731
      %1733 = vrot.lane.b32.xlu0 %v1362, 1
      %v1734 = vpop.permute.xlu0 %1733
      %1735 = vrot.lane.b32.xlu0 %v1363, 1
      %v1736 = vpop.permute.xlu0 %1735
      %1737 = vrot.lane.b32.xlu0 %v1364, 1
      %v1738 = vpop.permute.xlu0 %1737
      %vm1739 = vcmask 7168
      %v1740 = vsel %vm1739, %v1732, %v1734
      %v1741 = vsel %vm1739, %v1734, %v1736
      %v1742 = vsel %vm1739, %v1736, %v1738
      %v1744 = vsel %vm310, %v1730, 0
      %v1747 = vsel %vm314, %v1740, 0
      %v1750 = vsel %vm314, %v1741, 0
      %v1753 = vsel %vm314, %v1742, 0
      %1755 = vmatprep.subr.bf16.mxu0 0
      %1756 = vmatpush1.bf16.msra.mxu0 0
      %1757 = vmatprep.subr.bf16.mxu0 0
      %1758 = vmatpush1.bf16.msra.mxu0 0
      %1759 = vmatprep.subr.bf16.mxu0 0
      %1760 = vmatpush1.bf16.msra.mxu0 0
      %1761 = vmatprep.subr.bf16.mxu0 0
      %1762 = vmatpush1.bf16.msra.mxu0 0
      %1763 = vmatprep.subr.bf16.mxu0 0
      %1764 = vmatpush1.bf16.msra.mxu0 0
      %1765 = vmatprep.subr.bf16.mxu0 0
      %1766 = vmatpush1.bf16.msra.mxu0 0
      %1767 = vmatprep.subr.bf16.mxu0 0
      %1768 = vmatpush1.bf16.msra.mxu0 0
      %1769 = vmatprep.subr.bf16.mxu0 %v1750
      %1770 = vmatpush1.bf16.msra.mxu0 %v1747
      %1771 = vmatprep.subr.bf16.mxu0 0
      %1772 = vmatpush2.bf16.msra.mxu0 0
      %1773 = vmatprep.subr.bf16.mxu0 0
      %1774 = vmatpush2.bf16.msra.mxu0 0
      %1775 = vmatprep.subr.bf16.mxu0 0
      %1776 = vmatpush2.bf16.msra.mxu0 0
      %1777 = vmatprep.subr.bf16.mxu0 0
      %1778 = vmatpush2.bf16.msra.mxu0 0
      %1779 = vmatprep.subr.bf16.mxu0 0
      %1780 = vmatpush2.bf16.msra.mxu0 0
      %1781 = vmatprep.subr.bf16.mxu0 0
      %1782 = vmatpush2.bf16.msra.mxu0 0
      %1783 = vmatprep.subr.bf16.mxu0 0
      %1784 = vmatpush2.bf16.msra.mxu0 0
      %1785 = vmatprep.subr.bf16.mxu0 0
      %1786 = vmatpush2.bf16.msra.mxu0 0
      %1787 = vmatprep.mubr.bf16.mxu0 0
      %1788 = vmatmul.mubr.bf16.gmra.mxu0 %v1744
      %v1789 = vpop.f32.mrf.mxu0
      %v1790 = vadd.f32 0.0, %v1789
      %v1791 = vpop.f32.mrf.mxu0
      %v1792 = vadd.f32 0.0, %v1791
      %v1793 = vpop.f32.mrf.mxu0
      %v1794 = vadd.f32 0.0, %v1793
      %v1795 = vpop.f32.mrf.mxu0
      %v1796 = vadd.f32 0.0, %v1795
      %1797 = vdwg.mxu0
      %1798 = vmatprep.subr.bf16.mxu0 0
      %1799 = vmatpush1.bf16.msra.mxu0 0
      %1800 = vmatprep.subr.bf16.mxu0 0
      %1801 = vmatpush1.bf16.msra.mxu0 0
      %1802 = vmatprep.subr.bf16.mxu0 0
      %1803 = vmatpush1.bf16.msra.mxu0 0
      %1804 = vmatprep.subr.bf16.mxu0 0
      %1805 = vmatpush1.bf16.msra.mxu0 0
      %1806 = vmatprep.subr.bf16.mxu0 0
      %1807 = vmatpush1.bf16.msra.mxu0 0
      %1808 = vmatprep.subr.bf16.mxu0 0
      %1809 = vmatpush1.bf16.msra.mxu0 0
      %1810 = vmatprep.subr.bf16.mxu0 0
      %1811 = vmatpush1.bf16.msra.mxu0 0
      %1812 = vmatprep.subr.bf16.mxu0 0
      %1813 = vmatpush1.bf16.msra.mxu0 %v1753
      %1814 = vmatprep.subr.bf16.mxu0 0
      %1815 = vmatpush2.bf16.msra.mxu0 0
      %1816 = vmatprep.subr.bf16.mxu0 0
      %1817 = vmatpush2.bf16.msra.mxu0 0
      %1818 = vmatprep.subr.bf16.mxu0 0
      %1819 = vmatpush2.bf16.msra.mxu0 0
      %1820 = vmatprep.subr.bf16.mxu0 0
      %1821 = vmatpush2.bf16.msra.mxu0 0
      %1822 = vmatprep.subr.bf16.mxu0 0
      %1823 = vmatpush2.bf16.msra.mxu0 0
      %1824 = vmatprep.subr.bf16.mxu0 0
      %1825 = vmatpush2.bf16.msra.mxu0 0
      %1826 = vmatprep.subr.bf16.mxu0 0
      %1827 = vmatpush2.bf16.msra.mxu0 0
      %1828 = vmatprep.subr.bf16.mxu0 0
      %1829 = vmatpush2.bf16.msra.mxu0 0
      %1830 = vmatprep.mubr.bf16.mxu0 0
      %1831 = vmatmul.mubr.bf16.gmra.mxu0 %v1744
      %v1832 = vpop.f32.mrf.mxu0
      %v1833 = vadd.f32 0.0, %v1832
      %v1834 = vpop.f32.mrf.mxu0
      %v1835 = vpop.f32.mrf.mxu0
      %v1836 = vadd.f32 0.0, %v1835
      %v1837 = vpop.f32.mrf.mxu0
      %1838 = vdwg.mxu0
      %v1839 = vadd.f32 %v1717, %v1790
      %v1840 = vadd.f32 %v1718, %v1792
      %v1841 = vadd.f32 %v1719, %v1833
      %v1842 = vadd.f32 %v1720, %v1794
      %v1843 = vadd.f32 %v1721, %v1796
      %v1844 = vadd.f32 %v1722, %v1836
      %s1845 = scalar_lea.vmem %s3, 32
      %v1846 = vld [vmem:[%s1845] sm:$0xf]
      %v1847 = vld [vmem:[%s1845 + $0x4] sm:$0xf]
      %v1850 = vunpack.c.l.b16 %v1846
      %v1851 = vunpack.c.l.b16 %v1847
      %v1852 = vpack.c.b16 %v1851, %v1850
      %v1854 = vsel %vm310, %v1852, 0
      %v1857 = vsel %vm314, %v1362, 0
      %v1860 = vsel %vm314, %v1363, 0
      %v1863 = vsel %vm314, %v1364, 0
      %1865 = vmatprep.subr.bf16.mxu0 0
      %1866 = vmatpush1.bf16.msra.mxu0 0
      %1867 = vmatprep.subr.bf16.mxu0 0
      %1868 = vmatpush1.bf16.msra.mxu0 0
      %1869 = vmatprep.subr.bf16.mxu0 0
      %1870 = vmatpush1.bf16.msra.mxu0 0
      %1871 = vmatprep.subr.bf16.mxu0 0
      %1872 = vmatpush1.bf16.msra.mxu0 0
      %1873 = vmatprep.subr.bf16.mxu0 0
      %1874 = vmatpush1.bf16.msra.mxu0 0
      %1875 = vmatprep.subr.bf16.mxu0 0
      %1876 = vmatpush1.bf16.msra.mxu0 0
      %1877 = vmatprep.subr.bf16.mxu0 0
      %1878 = vmatpush1.bf16.msra.mxu0 0
      %1879 = vmatprep.subr.bf16.mxu0 %v1860
      %1880 = vmatpush1.bf16.msra.mxu0 %v1857
      %1881 = vmatprep.subr.bf16.mxu0 0
      %1882 = vmatpush2.bf16.msra.mxu0 0
      %1883 = vmatprep.subr.bf16.mxu0 0
      %1884 = vmatpush2.bf16.msra.mxu0 0
      %1885 = vmatprep.subr.bf16.mxu0 0
      %1886 = vmatpush2.bf16.msra.mxu0 0
      %1887 = vmatprep.subr.bf16.mxu0 0
      %1888 = vmatpush2.bf16.msra.mxu0 0
      %1889 = vmatprep.subr.bf16.mxu0 0
      %1890 = vmatpush2.bf16.msra.mxu0 0
      %1891 = vmatprep.subr.bf16.mxu0 0
      %1892 = vmatpush2.bf16.msra.mxu0 0
      %1893 = vmatprep.subr.bf16.mxu0 0
      %1894 = vmatpush2.bf16.msra.mxu0 0
      %1895 = vmatprep.subr.bf16.mxu0 0
      %1896 = vmatpush2.bf16.msra.mxu0 0
      %1897 = vmatprep.mubr.bf16.mxu0 0
      %1898 = vmatmul.mubr.bf16.gmra.mxu0 %v1854
      %v1899 = vpop.f32.mrf.mxu0
      %v1900 = vadd.f32 0.0, %v1899
      %v1901 = vpop.f32.mrf.mxu0
      %v1902 = vadd.f32 0.0, %v1901
      %v1903 = vpop.f32.mrf.mxu0
      %v1904 = vadd.f32 0.0, %v1903
      %v1905 = vpop.f32.mrf.mxu0
      %v1906 = vadd.f32 0.0, %v1905
      %1907 = vdwg.mxu0
      %1908 = vmatprep.subr.bf16.mxu0 0
      %1909 = vmatpush1.bf16.msra.mxu0 0
      %1910 = vmatprep.subr.bf16.mxu0 0
      %1911 = vmatpush1.bf16.msra.mxu0 0
      %1912 = vmatprep.subr.bf16.mxu0 0
      %1913 = vmatpush1.bf16.msra.mxu0 0
      %1914 = vmatprep.subr.bf16.mxu0 0
      %1915 = vmatpush1.bf16.msra.mxu0 0
      %1916 = vmatprep.subr.bf16.mxu0 0
      %1917 = vmatpush1.bf16.msra.mxu0 0
      %1918 = vmatprep.subr.bf16.mxu0 0
      %1919 = vmatpush1.bf16.msra.mxu0 0
      %1920 = vmatprep.subr.bf16.mxu0 0
      %1921 = vmatpush1.bf16.msra.mxu0 0
      %1922 = vmatprep.subr.bf16.mxu0 0
      %1923 = vmatpush1.bf16.msra.mxu0 %v1863
      %1924 = vmatprep.subr.bf16.mxu0 0
      %1925 = vmatpush2.bf16.msra.mxu0 0
      %1926 = vmatprep.subr.bf16.mxu0 0
      %1927 = vmatpush2.bf16.msra.mxu0 0
      %1928 = vmatprep.subr.bf16.mxu0 0
      %1929 = vmatpush2.bf16.msra.mxu0 0
      %1930 = vmatprep.subr.bf16.mxu0 0
      %1931 = vmatpush2.bf16.msra.mxu0 0
      %1932 = vmatprep.subr.bf16.mxu0 0
      %1933 = vmatpush2.bf16.msra.mxu0 0
      %1934 = vmatprep.subr.bf16.mxu0 0
      %1935 = vmatpush2.bf16.msra.mxu0 0
      %1936 = vmatprep.subr.bf16.mxu0 0
      %1937 = vmatpush2.bf16.msra.mxu0 0
      %1938 = vmatprep.subr.bf16.mxu0 0
      %1939 = vmatpush2.bf16.msra.mxu0 0
      %1940 = vmatprep.mubr.bf16.mxu0 0
      %1941 = vmatmul.mubr.bf16.gmra.mxu0 %v1854
      %v1942 = vpop.f32.mrf.mxu0
      %v1943 = vadd.f32 0.0, %v1942
      %v1944 = vpop.f32.mrf.mxu0
      %v1945 = vpop.f32.mrf.mxu0
      %v1946 = vadd.f32 0.0, %v1945
      %v1947 = vpop.f32.mrf.mxu0
      %1948 = vdwg.mxu0
      %v1949 = vadd.f32 %v1839, %v1900
      %v1950 = vadd.f32 %v1840, %v1902
      %v1951 = vadd.f32 %v1841, %v1943
      %v1952 = vadd.f32 %v1842, %v1904
      %v1953 = vadd.f32 %v1843, %v1906
      %v1954 = vadd.f32 %v1844, %v1946
      %s1955 = scalar_lea.vmem %s3, 40
      %v1956 = vld [vmem:[%s1955] sm:$0xf]
      %v1957 = vld [vmem:[%s1955 + $0x4] sm:$0xf]
      %v1960 = vunpack.c.l.b16 %v1956
      %v1961 = vunpack.c.l.b16 %v1957
      %v1962 = vpack.c.b16 %v1961, %v1960
      %v1964 = vunpack.c.l.b16 %v1335
      %v1965 = vpack.c.b16 %v1964, %v1964
      %1966 = vrot.lane.b32.xlu0 %v1362, 127
      %v1967 = vpop.permute.xlu0 %1966
      %1968 = vrot.lane.b32.xlu0 %v1363, 127
      %v1969 = vpop.permute.xlu0 %1968
      %1970 = vrot.lane.b32.xlu0 %v1364, 127
      %v1971 = vpop.permute.xlu0 %1970
      %1972 = vrot.lane.b32.xlu0 %v1965, 127
      %v1973 = vpop.permute.xlu0 %1972
      %v1974 = vsel %vm420, %v1967, %v1969
      %v1975 = vsel %vm420, %v1969, %v1971
      %v1976 = vsel %vm420, %v1971, %v1973
      %v1978 = vsel %vm310, %v1962, 0
      %v1981 = vsel %vm314, %v1974, 0
      %v1984 = vsel %vm314, %v1975, 0
      %v1987 = vsel %vm314, %v1976, 0
      %1989 = vmatprep.subr.bf16.mxu0 0
      %1990 = vmatpush1.bf16.msra.mxu0 0
      %1991 = vmatprep.subr.bf16.mxu0 0
      %1992 = vmatpush1.bf16.msra.mxu0 0
      %1993 = vmatprep.subr.bf16.mxu0 0
      %1994 = vmatpush1.bf16.msra.mxu0 0
      %1995 = vmatprep.subr.bf16.mxu0 0
      %1996 = vmatpush1.bf16.msra.mxu0 0
      %1997 = vmatprep.subr.bf16.mxu0 0
      %1998 = vmatpush1.bf16.msra.mxu0 0
      %1999 = vmatprep.subr.bf16.mxu0 0
      %2000 = vmatpush1.bf16.msra.mxu0 0
      %2001 = vmatprep.subr.bf16.mxu0 0
      %2002 = vmatpush1.bf16.msra.mxu0 0
      %2003 = vmatprep.subr.bf16.mxu0 %v1984
      %2004 = vmatpush1.bf16.msra.mxu0 %v1981
      %2005 = vmatprep.subr.bf16.mxu0 0
      %2006 = vmatpush2.bf16.msra.mxu0 0
      %2007 = vmatprep.subr.bf16.mxu0 0
      %2008 = vmatpush2.bf16.msra.mxu0 0
      %2009 = vmatprep.subr.bf16.mxu0 0
      %2010 = vmatpush2.bf16.msra.mxu0 0
      %2011 = vmatprep.subr.bf16.mxu0 0
      %2012 = vmatpush2.bf16.msra.mxu0 0
      %2013 = vmatprep.subr.bf16.mxu0 0
      %2014 = vmatpush2.bf16.msra.mxu0 0
      %2015 = vmatprep.subr.bf16.mxu0 0
      %2016 = vmatpush2.bf16.msra.mxu0 0
      %2017 = vmatprep.subr.bf16.mxu0 0
      %2018 = vmatpush2.bf16.msra.mxu0 0
      %2019 = vmatprep.subr.bf16.mxu0 0
      %2020 = vmatpush2.bf16.msra.mxu0 0
      %2021 = vmatprep.mubr.bf16.mxu0 0
      %2022 = vmatmul.mubr.bf16.gmra.mxu0 %v1978
      %v2023 = vpop.f32.mrf.mxu0
      %v2024 = vadd.f32 0.0, %v2023
      %v2025 = vpop.f32.mrf.mxu0
      %v2026 = vadd.f32 0.0, %v2025
      %v2027 = vpop.f32.mrf.mxu0
      %v2028 = vadd.f32 0.0, %v2027
      %v2029 = vpop.f32.mrf.mxu0
      %v2030 = vadd.f32 0.0, %v2029
      %2031 = vdwg.mxu0
      %2032 = vmatprep.subr.bf16.mxu0 0
      %2033 = vmatpush1.bf16.msra.mxu0 0
      %2034 = vmatprep.subr.bf16.mxu0 0
      %2035 = vmatpush1.bf16.msra.mxu0 0
      %2036 = vmatprep.subr.bf16.mxu0 0
      %2037 = vmatpush1.bf16.msra.mxu0 0
      %2038 = vmatprep.subr.bf16.mxu0 0
      %2039 = vmatpush1.bf16.msra.mxu0 0
      %2040 = vmatprep.subr.bf16.mxu0 0
      %2041 = vmatpush1.bf16.msra.mxu0 0
      %2042 = vmatprep.subr.bf16.mxu0 0
      %2043 = vmatpush1.bf16.msra.mxu0 0
      %2044 = vmatprep.subr.bf16.mxu0 0
      %2045 = vmatpush1.bf16.msra.mxu0 0
      %2046 = vmatprep.subr.bf16.mxu0 0
      %2047 = vmatpush1.bf16.msra.mxu0 %v1987
      %2048 = vmatprep.subr.bf16.mxu0 0
      %2049 = vmatpush2.bf16.msra.mxu0 0
      %2050 = vmatprep.subr.bf16.mxu0 0
      %2051 = vmatpush2.bf16.msra.mxu0 0
      %2052 = vmatprep.subr.bf16.mxu0 0
      %2053 = vmatpush2.bf16.msra.mxu0 0
      %2054 = vmatprep.subr.bf16.mxu0 0
      %2055 = vmatpush2.bf16.msra.mxu0 0
      %2056 = vmatprep.subr.bf16.mxu0 0
      %2057 = vmatpush2.bf16.msra.mxu0 0
      %2058 = vmatprep.subr.bf16.mxu0 0
      %2059 = vmatpush2.bf16.msra.mxu0 0
      %2060 = vmatprep.subr.bf16.mxu0 0
      %2061 = vmatpush2.bf16.msra.mxu0 0
      %2062 = vmatprep.subr.bf16.mxu0 0
      %2063 = vmatpush2.bf16.msra.mxu0 0
      %2064 = vmatprep.mubr.bf16.mxu0 0
      %2065 = vmatmul.mubr.bf16.gmra.mxu0 %v1978
      %v2066 = vpop.f32.mrf.mxu0
      %v2067 = vadd.f32 0.0, %v2066
      %v2068 = vpop.f32.mrf.mxu0
      %v2069 = vpop.f32.mrf.mxu0
      %v2070 = vadd.f32 0.0, %v2069
      %v2071 = vpop.f32.mrf.mxu0
      %2072 = vdwg.mxu0
      %v2073 = vadd.f32 %v1949, %v2024
      %v2074 = vadd.f32 %v1950, %v2026
      %v2075 = vadd.f32 %v1951, %v2067
      %v2076 = vadd.f32 %v1952, %v2028
      %v2077 = vadd.f32 %v1953, %v2030
      %v2078 = vadd.f32 %v1954, %v2070
      %s2079 = scalar_lea.vmem %s3, 48
      %v2080 = vld [vmem:[%s2079] sm:$0xf]
      %v2081 = vld [vmem:[%s2079 + $0x4] sm:$0xf]
      %v2084 = vunpack.c.l.b16 %v2080
      %v2085 = vunpack.c.l.b16 %v2081
      %v2086 = vpack.c.b16 %v2085, %v2084
      %2087 = vrot.lane.b32.xlu0 %v1362, 111
      %v2088 = vpop.permute.xlu0 %2087
      %2089 = vrot.lane.b32.xlu0 %v1363, 111
      %v2090 = vpop.permute.xlu0 %2089
      %2091 = vrot.lane.b32.xlu0 %v1364, 111
      %v2092 = vpop.permute.xlu0 %2091
      %2093 = vrot.lane.b32.xlu0 %v1965, 111
      %v2094 = vpop.permute.xlu0 %2093
      %vm2095 = vcmask 908288
      %v2096 = vsel %vm2095, %v2088, %v2090
      %v2097 = vsel %vm2095, %v2090, %v2092
      %v2098 = vsel %vm2095, %v2092, %v2094
      %v2100 = vsel %vm310, %v2086, 0
      %v2103 = vsel %vm314, %v2096, 0
      %v2106 = vsel %vm314, %v2097, 0
      %v2109 = vsel %vm314, %v2098, 0
      %2111 = vmatprep.subr.bf16.mxu0 0
      %2112 = vmatpush1.bf16.msra.mxu0 0
      %2113 = vmatprep.subr.bf16.mxu0 0
      %2114 = vmatpush1.bf16.msra.mxu0 0
      %2115 = vmatprep.subr.bf16.mxu0 0
      %2116 = vmatpush1.bf16.msra.mxu0 0
      %2117 = vmatprep.subr.bf16.mxu0 0
      %2118 = vmatpush1.bf16.msra.mxu0 0
      %2119 = vmatprep.subr.bf16.mxu0 0
      %2120 = vmatpush1.bf16.msra.mxu0 0
      %2121 = vmatprep.subr.bf16.mxu0 0
      %2122 = vmatpush1.bf16.msra.mxu0 0
      %2123 = vmatprep.subr.bf16.mxu0 0
      %2124 = vmatpush1.bf16.msra.mxu0 0
      %2125 = vmatprep.subr.bf16.mxu0 %v2106
      %2126 = vmatpush1.bf16.msra.mxu0 %v2103
      %2127 = vmatprep.subr.bf16.mxu0 0
      %2128 = vmatpush2.bf16.msra.mxu0 0
      %2129 = vmatprep.subr.bf16.mxu0 0
      %2130 = vmatpush2.bf16.msra.mxu0 0
      %2131 = vmatprep.subr.bf16.mxu0 0
      %2132 = vmatpush2.bf16.msra.mxu0 0
      %2133 = vmatprep.subr.bf16.mxu0 0
      %2134 = vmatpush2.bf16.msra.mxu0 0
      %2135 = vmatprep.subr.bf16.mxu0 0
      %2136 = vmatpush2.bf16.msra.mxu0 0
      %2137 = vmatprep.subr.bf16.mxu0 0
      %2138 = vmatpush2.bf16.msra.mxu0 0
      %2139 = vmatprep.subr.bf16.mxu0 0
      %2140 = vmatpush2.bf16.msra.mxu0 0
      %2141 = vmatprep.subr.bf16.mxu0 0
      %2142 = vmatpush2.bf16.msra.mxu0 0
      %2143 = vmatprep.mubr.bf16.mxu0 0
      %2144 = vmatmul.mubr.bf16.gmra.mxu0 %v2100
      %v2145 = vpop.f32.mrf.mxu0
      %v2146 = vadd.f32 0.0, %v2145
      %v2147 = vpop.f32.mrf.mxu0
      %v2148 = vadd.f32 0.0, %v2147
      %v2149 = vpop.f32.mrf.mxu0
      %v2150 = vadd.f32 0.0, %v2149
      %v2151 = vpop.f32.mrf.mxu0
      %v2152 = vadd.f32 0.0, %v2151
      %2153 = vdwg.mxu0
      %2154 = vmatprep.subr.bf16.mxu0 0
      %2155 = vmatpush1.bf16.msra.mxu0 0
      %2156 = vmatprep.subr.bf16.mxu0 0
      %2157 = vmatpush1.bf16.msra.mxu0 0
      %2158 = vmatprep.subr.bf16.mxu0 0
      %2159 = vmatpush1.bf16.msra.mxu0 0
      %2160 = vmatprep.subr.bf16.mxu0 0
      %2161 = vmatpush1.bf16.msra.mxu0 0
      %2162 = vmatprep.subr.bf16.mxu0 0
      %2163 = vmatpush1.bf16.msra.mxu0 0
      %2164 = vmatprep.subr.bf16.mxu0 0
      %2165 = vmatpush1.bf16.msra.mxu0 0
      %2166 = vmatprep.subr.bf16.mxu0 0
      %2167 = vmatpush1.bf16.msra.mxu0 0
      %2168 = vmatprep.subr.bf16.mxu0 0
      %2169 = vmatpush1.bf16.msra.mxu0 %v2109
      %2170 = vmatprep.subr.bf16.mxu0 0
      %2171 = vmatpush2.bf16.msra.mxu0 0
      %2172 = vmatprep.subr.bf16.mxu0 0
      %2173 = vmatpush2.bf16.msra.mxu0 0
      %2174 = vmatprep.subr.bf16.mxu0 0
      %2175 = vmatpush2.bf16.msra.mxu0 0
      %2176 = vmatprep.subr.bf16.mxu0 0
      %2177 = vmatpush2.bf16.msra.mxu0 0
      %2178 = vmatprep.subr.bf16.mxu0 0
      %2179 = vmatpush2.bf16.msra.mxu0 0
      %2180 = vmatprep.subr.bf16.mxu0 0
      %2181 = vmatpush2.bf16.msra.mxu0 0
      %2182 = vmatprep.subr.bf16.mxu0 0
      %2183 = vmatpush2.bf16.msra.mxu0 0
      %2184 = vmatprep.subr.bf16.mxu0 0
      %2185 = vmatpush2.bf16.msra.mxu0 0
      %2186 = vmatprep.mubr.bf16.mxu0 0
      %2187 = vmatmul.mubr.bf16.gmra.mxu0 %v2100
      %v2188 = vpop.f32.mrf.mxu0
      %v2189 = vadd.f32 0.0, %v2188
      %v2190 = vpop.f32.mrf.mxu0
      %v2191 = vpop.f32.mrf.mxu0
      %v2192 = vadd.f32 0.0, %v2191
      %v2193 = vpop.f32.mrf.mxu0
      %2194 = vdwg.mxu0
      %v2195 = vadd.f32 %v2073, %v2146
      %v2196 = vadd.f32 %v2074, %v2148
      %v2197 = vadd.f32 %v2075, %v2189
      %v2198 = vadd.f32 %v2076, %v2150
      %v2199 = vadd.f32 %v2077, %v2152
      %v2200 = vadd.f32 %v2078, %v2192
      %s2201 = scalar_lea.vmem %s3, 56
      %v2202 = vld [vmem:[%s2201] sm:$0xf]
      %v2203 = vld [vmem:[%s2201 + $0x4] sm:$0xf]
      %v2206 = vunpack.c.l.b16 %v2202
      %v2207 = vunpack.c.l.b16 %v2203
      %v2208 = vpack.c.b16 %v2207, %v2206
      %2209 = vrot.lane.b32.xlu0 %v1362, 110
      %v2210 = vpop.permute.xlu0 %2209
      %2211 = vrot.lane.b32.xlu0 %v1363, 110
      %v2212 = vpop.permute.xlu0 %2211
      %2213 = vrot.lane.b32.xlu0 %v1364, 110
      %v2214 = vpop.permute.xlu0 %2213
      %2215 = vrot.lane.b32.xlu0 %v1965, 110
      %v2216 = vpop.permute.xlu0 %2215
      %v2217 = vsel %vm640, %v2210, %v2212
      %v2218 = vsel %vm640, %v2212, %v2214
      %v2219 = vsel %vm640, %v2214, %v2216
      %v2221 = vsel %vm310, %v2208, 0
      %v2224 = vsel %vm314, %v2217, 0
      %v2227 = vsel %vm314, %v2218, 0
      %v2230 = vsel %vm314, %v2219, 0
      %2232 = vmatprep.subr.bf16.mxu0 0
      %2233 = vmatpush1.bf16.msra.mxu0 0
      %2234 = vmatprep.subr.bf16.mxu0 0
      %2235 = vmatpush1.bf16.msra.mxu0 0
      %2236 = vmatprep.subr.bf16.mxu0 0
      %2237 = vmatpush1.bf16.msra.mxu0 0
      %2238 = vmatprep.subr.bf16.mxu0 0
      %2239 = vmatpush1.bf16.msra.mxu0 0
      %2240 = vmatprep.subr.bf16.mxu0 0
      %2241 = vmatpush1.bf16.msra.mxu0 0
      %2242 = vmatprep.subr.bf16.mxu0 0
      %2243 = vmatpush1.bf16.msra.mxu0 0
      %2244 = vmatprep.subr.bf16.mxu0 0
      %2245 = vmatpush1.bf16.msra.mxu0 0
      %2246 = vmatprep.subr.bf16.mxu0 %v2227
      %2247 = vmatpush1.bf16.msra.mxu0 %v2224
      %2248 = vmatprep.subr.bf16.mxu0 0
      %2249 = vmatpush2.bf16.msra.mxu0 0
      %2250 = vmatprep.subr.bf16.mxu0 0
      %2251 = vmatpush2.bf16.msra.mxu0 0
      %2252 = vmatprep.subr.bf16.mxu0 0
      %2253 = vmatpush2.bf16.msra.mxu0 0
      %2254 = vmatprep.subr.bf16.mxu0 0
      %2255 = vmatpush2.bf16.msra.mxu0 0
      %2256 = vmatprep.subr.bf16.mxu0 0
      %2257 = vmatpush2.bf16.msra.mxu0 0
      %2258 = vmatprep.subr.bf16.mxu0 0
      %2259 = vmatpush2.bf16.msra.mxu0 0
      %2260 = vmatprep.subr.bf16.mxu0 0
      %2261 = vmatpush2.bf16.msra.mxu0 0
      %2262 = vmatprep.subr.bf16.mxu0 0
      %2263 = vmatpush2.bf16.msra.mxu0 0
      %2264 = vmatprep.mubr.bf16.mxu0 0
      %2265 = vmatmul.mubr.bf16.gmra.mxu0 %v2221
      %v2266 = vpop.f32.mrf.mxu0
      %v2267 = vadd.f32 0.0, %v2266
      %v2268 = vpop.f32.mrf.mxu0
      %v2269 = vadd.f32 0.0, %v2268
      %v2270 = vpop.f32.mrf.mxu0
      %v2271 = vadd.f32 0.0, %v2270
      %v2272 = vpop.f32.mrf.mxu0
      %v2273 = vadd.f32 0.0, %v2272
      %2274 = vdwg.mxu0
      %2275 = vmatprep.subr.bf16.mxu0 0
      %2276 = vmatpush1.bf16.msra.mxu0 0
      %2277 = vmatprep.subr.bf16.mxu0 0
      %2278 = vmatpush1.bf16.msra.mxu0 0
      %2279 = vmatprep.subr.bf16.mxu0 0
      %2280 = vmatpush1.bf16.msra.mxu0 0
      %2281 = vmatprep.subr.bf16.mxu0 0
      %2282 = vmatpush1.bf16.msra.mxu0 0
      %2283 = vmatprep.subr.bf16.mxu0 0
      %2284 = vmatpush1.bf16.msra.mxu0 0
      %2285 = vmatprep.subr.bf16.mxu0 0
      %2286 = vmatpush1.bf16.msra.mxu0 0
      %2287 = vmatprep.subr.bf16.mxu0 0
      %2288 = vmatpush1.bf16.msra.mxu0 0
      %2289 = vmatprep.subr.bf16.mxu0 0
      %2290 = vmatpush1.bf16.msra.mxu0 %v2230
      %2291 = vmatprep.subr.bf16.mxu0 0
      %2292 = vmatpush2.bf16.msra.mxu0 0
      %2293 = vmatprep.subr.bf16.mxu0 0
      %2294 = vmatpush2.bf16.msra.mxu0 0
      %2295 = vmatprep.subr.bf16.mxu0 0
      %2296 = vmatpush2.bf16.msra.mxu0 0
      %2297 = vmatprep.subr.bf16.mxu0 0
      %2298 = vmatpush2.bf16.msra.mxu0 0
      %2299 = vmatprep.subr.bf16.mxu0 0
      %2300 = vmatpush2.bf16.msra.mxu0 0
      %2301 = vmatprep.subr.bf16.mxu0 0
      %2302 = vmatpush2.bf16.msra.mxu0 0
      %2303 = vmatprep.subr.bf16.mxu0 0
      %2304 = vmatpush2.bf16.msra.mxu0 0
      %2305 = vmatprep.subr.bf16.mxu0 0
      %2306 = vmatpush2.bf16.msra.mxu0 0
      %2307 = vmatprep.mubr.bf16.mxu0 0
      %2308 = vmatmul.mubr.bf16.gmra.mxu0 %v2221
      %v2309 = vpop.f32.mrf.mxu0
      %v2310 = vadd.f32 0.0, %v2309
      %v2311 = vpop.f32.mrf.mxu0
      %v2312 = vpop.f32.mrf.mxu0
      %v2313 = vadd.f32 0.0, %v2312
      %v2314 = vpop.f32.mrf.mxu0
      %2315 = vdwg.mxu0
      %v2316 = vadd.f32 %v2195, %v2267
      %v2317 = vadd.f32 %v2196, %v2269
      %v2318 = vadd.f32 %v2197, %v2310
      %v2319 = vadd.f32 %v2198, %v2271
      %v2320 = vadd.f32 %v2199, %v2273
      %v2321 = vadd.f32 %v2200, %v2313
      %s2322 = scalar_lea.vmem %s3, 64
      %v2323 = vld [vmem:[%s2322] sm:$0xf]
      %v2324 = vld [vmem:[%s2322 + $0x4] sm:$0xf]
      %v2327 = vunpack.c.l.b16 %v2323
      %v2328 = vunpack.c.l.b16 %v2324
      %v2329 = vpack.c.b16 %v2328, %v2327
      %2330 = vrot.lane.b32.xlu0 %v1362, 109
      %v2331 = vpop.permute.xlu0 %2330
      %2332 = vrot.lane.b32.xlu0 %v1363, 109
      %v2333 = vpop.permute.xlu0 %2332
      %2334 = vrot.lane.b32.xlu0 %v1364, 109
      %v2335 = vpop.permute.xlu0 %2334
      %2336 = vrot.lane.b32.xlu0 %v1965, 109
      %v2337 = vpop.permute.xlu0 %2336
      %v2338 = vsel %vm750, %v2331, %v2333
      %v2339 = vsel %vm750, %v2333, %v2335
      %v2340 = vsel %vm750, %v2335, %v2337
      %v2342 = vsel %vm310, %v2329, 0
      %v2345 = vsel %vm314, %v2338, 0
      %v2348 = vsel %vm314, %v2339, 0
      %v2351 = vsel %vm314, %v2340, 0
      %2353 = vmatprep.subr.bf16.mxu0 0
      %2354 = vmatpush1.bf16.msra.mxu0 0
      %2355 = vmatprep.subr.bf16.mxu0 0
      %2356 = vmatpush1.bf16.msra.mxu0 0
      %2357 = vmatprep.subr.bf16.mxu0 0
      %2358 = vmatpush1.bf16.msra.mxu0 0
      %2359 = vmatprep.subr.bf16.mxu0 0
      %2360 = vmatpush1.bf16.msra.mxu0 0
      %2361 = vmatprep.subr.bf16.mxu0 0
      %2362 = vmatpush1.bf16.msra.mxu0 0
      %2363 = vmatprep.subr.bf16.mxu0 0
      %2364 = vmatpush1.bf16.msra.mxu0 0
      %2365 = vmatprep.subr.bf16.mxu0 0
      %2366 = vmatpush1.bf16.msra.mxu0 0
      %2367 = vmatprep.subr.bf16.mxu0 %v2348
      %2368 = vmatpush1.bf16.msra.mxu0 %v2345
      %2369 = vmatprep.subr.bf16.mxu0 0
      %2370 = vmatpush2.bf16.msra.mxu0 0
      %2371 = vmatprep.subr.bf16.mxu0 0
      %2372 = vmatpush2.bf16.msra.mxu0 0
      %2373 = vmatprep.subr.bf16.mxu0 0
      %2374 = vmatpush2.bf16.msra.mxu0 0
      %2375 = vmatprep.subr.bf16.mxu0 0
      %2376 = vmatpush2.bf16.msra.mxu0 0
      %2377 = vmatprep.subr.bf16.mxu0 0
      %2378 = vmatpush2.bf16.msra.mxu0 0
      %2379 = vmatprep.subr.bf16.mxu0 0
      %2380 = vmatpush2.bf16.msra.mxu0 0
      %2381 = vmatprep.subr.bf16.mxu0 0
      %2382 = vmatpush2.bf16.msra.mxu0 0
      %2383 = vmatprep.subr.bf16.mxu0 0
      %2384 = vmatpush2.bf16.msra.mxu0 0
      %2385 = vmatprep.mubr.bf16.mxu0 0
      %2386 = vmatmul.mubr.bf16.gmra.mxu0 %v2342
      %v2387 = vpop.f32.mrf.mxu0
      %v2388 = vadd.f32 0.0, %v2387
      %v2389 = vpop.f32.mrf.mxu0
      %v2390 = vadd.f32 0.0, %v2389
      %v2391 = vpop.f32.mrf.mxu0
      %v2392 = vadd.f32 0.0, %v2391
      %v2393 = vpop.f32.mrf.mxu0
      %v2394 = vadd.f32 0.0, %v2393
      %2395 = vdwg.mxu0
      %2396 = vmatprep.subr.bf16.mxu0 0
      %2397 = vmatpush1.bf16.msra.mxu0 0
      %2398 = vmatprep.subr.bf16.mxu0 0
      %2399 = vmatpush1.bf16.msra.mxu0 0
      %2400 = vmatprep.subr.bf16.mxu0 0
      %2401 = vmatpush1.bf16.msra.mxu0 0
      %2402 = vmatprep.subr.bf16.mxu0 0
      %2403 = vmatpush1.bf16.msra.mxu0 0
      %2404 = vmatprep.subr.bf16.mxu0 0
      %2405 = vmatpush1.bf16.msra.mxu0 0
      %2406 = vmatprep.subr.bf16.mxu0 0
      %2407 = vmatpush1.bf16.msra.mxu0 0
      %2408 = vmatprep.subr.bf16.mxu0 0
      %2409 = vmatpush1.bf16.msra.mxu0 0
      %2410 = vmatprep.subr.bf16.mxu0 0
      %2411 = vmatpush1.bf16.msra.mxu0 %v2351
      %2412 = vmatprep.subr.bf16.mxu0 0
      %2413 = vmatpush2.bf16.msra.mxu0 0
      %2414 = vmatprep.subr.bf16.mxu0 0
      %2415 = vmatpush2.bf16.msra.mxu0 0
      %2416 = vmatprep.subr.bf16.mxu0 0
      %2417 = vmatpush2.bf16.msra.mxu0 0
      %2418 = vmatprep.subr.bf16.mxu0 0
      %2419 = vmatpush2.bf16.msra.mxu0 0
      %2420 = vmatprep.subr.bf16.mxu0 0
      %2421 = vmatpush2.bf16.msra.mxu0 0
      %2422 = vmatprep.subr.bf16.mxu0 0
      %2423 = vmatpush2.bf16.msra.mxu0 0
      %2424 = vmatprep.subr.bf16.mxu0 0
      %2425 = vmatpush2.bf16.msra.mxu0 0
      %2426 = vmatprep.subr.bf16.mxu0 0
      %2427 = vmatpush2.bf16.msra.mxu0 0
      %2428 = vmatprep.mubr.bf16.mxu0 0
      %2429 = vmatmul.mubr.bf16.gmra.mxu0 %v2342
      %v2430 = vpop.f32.mrf.mxu0
      %v2431 = vadd.f32 0.0, %v2430
      %v2432 = vpop.f32.mrf.mxu0
      %v2433 = vpop.f32.mrf.mxu0
      %v2434 = vadd.f32 0.0, %v2433
      %v2435 = vpop.f32.mrf.mxu0
      %2436 = vdwg.mxu0
      %v2437 = vadd.f32 %v2316, %v2388
      %v2438 = vadd.f32 %v2317, %v2390
      %v2439 = vadd.f32 %v2318, %v2431
      %v2440 = vadd.f32 %v2319, %v2392
      %v2441 = vadd.f32 %v2320, %v2394
      %v2442 = vadd.f32 %v2321, %v2434
      %v2443 = vmax.f32 %v2437, 0.0
      %v2444 = vmax.f32 %v2438, 0.0
      %v2445 = vmax.f32 %v2439, 0.0
      %v2446 = vmax.f32 %v2440, 0.0
      %v2447 = vmax.f32 %v2441, 0.0
      %v2448 = vmax.f32 %v2442, 0.0
      %2449 = vst [vmem:[%s291] sm:$0xff] %v2443
      %2450 = vst [vmem:[%s291 + $0x8] sm:$0xff] %v2444
      %2451 = vst [vmem:[%s291 + $0x10] sm:$0xff] %v2445
      %2452 = vst [vmem:[%s291 + $0x18] sm:$0xff] %v2446
      %2453 = vst [vmem:[%s291 + $0x20] sm:$0xff] %v2447
      %2454 = vst [vmem:[%s291 + $0x28] sm:$0xff] %v2448
      %p2455 = scmp.lt.s32.totalorder %s19, 1
      %s2456 = scalar_select %p2455, %s19, 1
      %s2457 = smul.addr %s2456, 3
      %s2458 = smul.addr %s2457, 8
      %s2459 = scalar_lea.vmem %s6, %s2458
      %p2460 = scmp.lt.s32.totalorder %s19, 1
      %s2461 = scalar_select %p2460, %s19, 1
      %s2462 = smul.addr %s2461, 6
      %s2463 = smul.addr %s2462, 8
      %s2464 = scalar_lea.vmem %s7, %s2463
      // Predicated region
      $region45: #{_fused_feature_forward.1} parent=43 // pred_check
        %p2465 = pneg %p168
      $region46: #{_fused_feature_forward.1} parent=43 // pred_check_branch
        %2467 = sbr.rel (%p2465) target = $region48
      $region47: #{_fused_feature_forward.1} parent=43 // pred_region
        _
      $region48: #{_fused_feature_forward.1} parent=43 // pred_fallthru
        _
      // Predicated region
      $region49: #{_fused_feature_forward.1} parent=43 // pred_check
        %p2468 = pneg %p194
      $region50: #{_fused_feature_forward.1} parent=43 // pred_check_branch
        %2470 = sbr.rel (%p2468) target = $region52
      $region51: #{_fused_feature_forward.1} parent=43 // pred_region
        _
      $region52: #{_fused_feature_forward.1} parent=43 // pred_fallthru
        _
    $region44: #{_fused_feature_forward.1} parent=5 // pred_fallthru
      _
    %p2471 = scmp.le.s32.totalorder 2, %s14
    // Predicated region
    $region53: #{_fused_feature_forward.1} parent=5 // pred_check
      %p2472 = pneg %p2471
    $region54: #{_fused_feature_forward.1} parent=5 // pred_check_branch
      %2474 = sbr.rel (%p2472) target = $region56
    $region55: #{_fused_feature_forward.1} parent=5 // pred_region
      %s2475 = ssub.s32 %s14, 2
      // Predicated region
      $region57: #{_fused_feature_forward.1} parent=55 // pred_check
        %p2476 = pneg %p174
      $region58: #{_fused_feature_forward.1} parent=55 // pred_check_branch
        %2478 = sbr.rel (%p2476) target = $region60
      $region59: #{_fused_feature_forward.1} parent=55 // pred_region
        %p2479 = scmp.lt.s32.totalorder %s20, 1
        %s2480 = scalar_select %p2479, %s20, 1
        %s2481 = smul.addr %s2480, 3
        %s2482 = smul.addr %s2481, 8
        %s2483 = scalar_lea.vmem %s6, %s2482
      $region60: #{_fused_feature_forward.1} parent=55 // pred_fallthru
        _
      // Predicated region
      $region61: #{_fused_feature_forward.1} parent=55 // pred_check
        %p2484 = pneg %p200
      $region62: #{_fused_feature_forward.1} parent=55 // pred_check_branch
        %2486 = sbr.rel (%p2484) target = $region64
      $region63: #{_fused_feature_forward.1} parent=55 // pred_region
        %p2487 = scmp.lt.s32.totalorder %s20, 1
        %s2488 = scalar_select %p2487, %s20, 1
        %s2489 = smul.addr %s2488, 6
        %s2490 = smul.addr %s2489, 8
        %s2491 = scalar_lea.vmem %s7, %s2490
      $region64: #{_fused_feature_forward.1} parent=55 // pred_fallthru
        _
    $region56: #{_fused_feature_forward.1} parent=5 // pred_fallthru
      _
  $region6: #{_fused_feature_forward.1} parent=0 // loop_footer
    %s18 = sadd.s32 1, %s14
  $region7: #{_fused_feature_forward.1} parent=0 // loop_footer_branch
    %13 = sbr.rel target = $region3
  $region8: #{_fused_feature_forward.1} parent=0 // loop_exit
    _

</llo_original>
